<compile_context>
chip_gen: v6e
topology: v6e:2x2x1
jax: 0.10.0
libtpu: 0.0.40
codegen_flags: <defaults>
</compile_context>

<pallas_src>
import functools

import jax
import jax.numpy as jnp
from jax.experimental import pallas as pl
from jax.experimental.pallas import tpu as pltpu


def _round_up(x, m):
    return (x + m - 1) // m * m


def _pick_rows_block(hw, cap=2048):
    """Largest row tile <= cap that divides hw and is a multiple of 8."""
    if hw <= cap:
        return hw
    r = (cap // 8) * 8
    while r >= 8:
        if hw % r == 0:
            return r
        r -= 8
    return hw  # no clean divisor -> fall back to the full extent


def _conv_stats_kernel(x_ref, w_ref, conv_ref, sum_ref, ssq_ref, *, fused, H, W):
    """One grid step: (batch n, channel block c, row tile r).

    fused=True : x_ref is (1, rows, 9*Cin) im2col rows, w_ref is (9*Cin, Cb).
    fused=False: x_ref is (1, H+2, W+2, Cin) zero-padded NHWC (whole image).
    conv_ref   : (1, rows, Cb) f32 conv output (no bias — cancelled by BN).
    sum_ref/ssq_ref : (1, 1, Cb) stats accumulated across the row-tile axis.
    """
    r = pl.program_id(2)

    @pl.when(r == 0)
    def _():
        sum_ref[...] = jnp.zeros_like(sum_ref)
        ssq_ref[...] = jnp.zeros_like(ssq_ref)

    rows, cb = conv_ref.shape[1], conv_ref.shape[2]

    if fused:
        k = x_ref.shape[-1]
        patch = x_ref[...].reshape(rows, k)                     # bf16, free squeeze
        acc = jnp.dot(patch, w_ref[...],
                      preferred_element_type=jnp.float32)       # MXU, f32 acc
    else:
        cin = x_ref.shape[-1]
        x = x_ref[...]                                          # bf16 padded tile
        acc = jnp.zeros((rows, cb), jnp.float32)
        for dy in range(3):
            for dx in range(3):
                k0 = (dy * 3 + dx) * cin
                tap = x[:, dy:dy + H, dx:dx + W, :].reshape(rows, cin)
                acc = acc + jnp.dot(tap, w_ref[k0:k0 + cin, :],
                                    preferred_element_type=jnp.float32)

    conv_ref[...] = acc[None].astype(conv_ref.dtype)
    # Partial batch-norm statistics (accumulated across row tiles).
    sum_ref[...] += jnp.sum(acc, axis=0, keepdims=True)[None]
    ssq_ref[...] += jnp.sum(acc * acc, axis=0, keepdims=True)[None]


def _bn_lrelu_kernel(y_ref, scale_ref, shift_ref, o_ref):
    """Elementwise: y * scale + shift, then LeakyReLU(0.2). Lane-dense blocks."""
    cb = scale_ref.shape[-1]
    z = (y_ref[...] * scale_ref[...].reshape(1, 1, cb)
         + shift_ref[...].reshape(1, 1, cb))
    o_ref[...] = jnp.where(z > 0, z, 0.2 * z).astype(o_ref.dtype)


@jax.jit
def vgg_layer_forward(x_nchw, w_hwio, b, gamma, beta):
    """x_nchw: (N, Cin, H, W) f32. Returns (N, Cout, H, W) f32."""
    del b  # Conv bias is exactly cancelled by training-mode BN mean subtraction.

    N, Cin, H, W = x_nchw.shape
    Cout = w_hwio.shape[-1]
    HW = H * W
    Cp = _round_up(Cout, 128)              # lane-dense channel padding
    # 256-wide channel blocks match the v6e/v7x 2x256^2 MXU; 128 otherwise.
    block_c = 256 if Cp % 256 == 0 else 128

    # NCHW -> NHWC (channels on the lane axis), zero-pad spatial by 1, bf16.
    x_nhwc = jnp.transpose(x_nchw, (0, 2, 3, 1)).astype(jnp.bfloat16)
    x_pad = jnp.pad(x_nhwc, ((0, 0), (1, 1), (1, 1), (0, 0)))

    # Weights: (3,3,Cin,Cout) -> (9*Cin, Cp), bf16, zero-padded extra channels.
    w2 = w_hwio.reshape(9 * Cin, Cout).astype(jnp.bfloat16)
    gamma_p, beta_p = gamma, beta
    if Cp != Cout:
        w2 = jnp.pad(w2, ((0, 0), (0, Cp - Cout)))
        gamma_p = jnp.pad(gamma, (0, Cp - Cout))   # padded channels: scale -> 0
        beta_p = jnp.pad(beta, (0, Cp - Cout))

    rows_block = _pick_rows_block(HW)
    fused = Cin <= 32
    if fused:
        # Small Cin: build the (N, HW, 9*Cin) im2col tensor once (tiny next to
        # the f32 conv output) so the kernel runs one lane-dense K=9*Cin matmul
        # per row tile.
        taps = [x_pad[:, dy:dy + H, dx:dx + W, :]
                for dy in range(3) for dx in range(3)]
        x_in = jnp.concatenate(taps, axis=-1).reshape(N, HW, 9 * Cin)
        rb1 = rows_block
        x_spec = pl.BlockSpec((1, rb1, 9 * Cin), lambda n, c, r: (n, r, 0))
    else:
        # Large Cin: K = Cin per tap already fills the MXU contraction dim.
        x_in = x_pad
        rb1 = HW
        x_spec = pl.BlockSpec((1, H + 2, W + 2, Cin),
                              lambda n, c, r: (n, 0, 0, 0))

    grid1 = (N, Cp // block_c, HW // rb1)
    cparams1 = pltpu.CompilerParams(
        # Row axis is the stats-accumulator reduction -> "arbitrary" (innermost).
        dimension_semantics=("parallel", "parallel", "arbitrary"),
        vmem_limit_bytes=48 * 1024 * 1024)             # within v7x's 64 MiB VMEM

    kernel1 = functools.partial(_conv_stats_kernel, fused=fused, H=H, W=W)
    conv_out, s_out, ss_out = pl.pallas_call(
        kernel1,
        out_shape=(jax.ShapeDtypeStruct((N, HW, Cp), jnp.float32),
                   jax.ShapeDtypeStruct((N, 1, Cp), jnp.float32),
                   jax.ShapeDtypeStruct((N, 1, Cp), jnp.float32)),
        grid_spec=pltpu.PrefetchScalarGridSpec(
            num_scalar_prefetch=0,
            grid=grid1,
            in_specs=[
                x_spec,
                pl.BlockSpec((9 * Cin, block_c), lambda n, c, r: (0, c)),
            ],
            out_specs=[
                pl.BlockSpec((1, rb1, block_c), lambda n, c, r: (n, r, c)),
                pl.BlockSpec((1, 1, block_c), lambda n, c, r: (n, 0, c)),
                pl.BlockSpec((1, 1, block_c), lambda n, c, r: (n, 0, c)),
            ]),
        compiler_params=cparams1,
    )(x_in, w2)

    # Global (biased) batch statistics from the per-batch partials.
    m_total = jnp.float32(N * HW)
    c_sum = jnp.sum(s_out, axis=(0, 1))
    c_ssq = jnp.sum(ss_out, axis=(0, 1))
    mean = c_sum / m_total
    var = jnp.maximum(c_ssq / m_total - mean * mean, 0.0)  # guard f32 cancellation
    scale = (gamma_p * jax.lax.rsqrt(var + 1e-5)).astype(jnp.float32)
    shift = (beta_p - mean * scale).astype(jnp.float32)
    scale2 = scale.reshape(1, Cp)
    shift2 = shift.reshape(1, Cp)

    rb2 = rows_block
    grid2 = (N, Cp // block_c, HW // rb2)
    cparams2 = pltpu.CompilerParams(
        dimension_semantics=("parallel", "parallel", "parallel"),
        vmem_limit_bytes=48 * 1024 * 1024)

    out_flat = pl.pallas_call(
        _bn_lrelu_kernel,
        out_shape=jax.ShapeDtypeStruct((N, HW, Cp), jnp.float32),
        grid_spec=pltpu.PrefetchScalarGridSpec(
            num_scalar_prefetch=0,
            grid=grid2,
            in_specs=[
                pl.BlockSpec((1, rb2, block_c), lambda n, c, r: (n, r, c)),
                pl.BlockSpec((1, block_c), lambda n, c, r: (0, c)),
                pl.BlockSpec((1, block_c), lambda n, c, r: (0, c)),
            ],
            out_specs=pl.BlockSpec((1, rb2, block_c),
                                   lambda n, c, r: (n, r, c))),
        compiler_params=cparams2,
        input_output_aliases={0: 0},   # normalize in place: no extra HBM buffer
    )(conv_out, scale2, shift2)

    # Drop channel padding, un-flatten, NHWC -> NCHW for the PyTorch interface.
    out = out_flat[..., :Cout].reshape(N, H, W, Cout)
    return jnp.transpose(out, (0, 3, 1, 2))


def init_params(key, nin, nout):
    """Deterministic init mirroring nn.Conv2d / nn.BatchNorm2d defaults."""
    kw, kb = jax.random.split(key)
    fan_in = nin * 3 * 3
    bound = 1.0 / jnp.sqrt(jnp.float32(fan_in))
    w_oihw = jax.random.uniform(kw, (nout, nin, 3, 3), jnp.float32,
                                minval=-bound, maxval=bound)
    w_hwio = jnp.transpose(w_oihw, (2, 3, 1, 0))
    b = jax.random.uniform(kb, (nout,), jnp.float32,
                           minval=-bound, maxval=bound)
    gamma = jnp.ones((nout,), jnp.float32)   # BatchNorm2d weight default
    beta = jnp.zeros((nout,), jnp.float32)   # BatchNorm2d bias default
    return w_hwio, b, gamma, beta


def _reference(x_nchw, w_hwio, b, gamma, beta):
    """Pure-JAX reference with the same bf16-operand conv precision."""
    xb = x_nchw.astype(jnp.bfloat16)
    wb = jnp.transpose(w_hwio, (3, 2, 0, 1)).astype(jnp.bfloat16)  # OIHW
    y = jax.lax.conv_general_dilated(
        xb, wb, window_strides=(1, 1), padding=((1, 1), (1, 1)),
        dimension_numbers=("NCHW", "OIHW", "NCHW"),
        preferred_element_type=jnp.float32)
    y = y + b[None, :, None, None]
    mean = jnp.mean(y, axis=(0, 2, 3), keepdims=True)
    var = jnp.mean((y - mean) ** 2, axis=(0, 2, 3), keepdims=True)
    y = (y - mean) * jax.lax.rsqrt(var + 1e-5)
    y = y * gamma[None, :, None, None] + beta[None, :, None, None]
    return jnp.where(y > 0, y, 0.2 * y)


if __name__ == "__main__":
    key = jax.random.PRNGKey(0)
    k_x, k_p = jax.random.split(key)

    N, NIN, NOUT, H, W = 2, 4, 32, 16, 16
    x = jax.random.normal(k_x, (N, NIN, H, W), jnp.float32)   # NCHW, like PyTorch
    w_hwio, b, gamma, beta = init_params(k_p, NIN, NOUT)

    out = vgg_layer_forward(x, w_hwio, b, gamma, beta)
    out = jax.block_until_ready(out)

    ref = _reference(x, w_hwio, b, gamma, beta)
    assert out.shape == (N, NOUT, H, W)
    err = float(jnp.max(jnp.abs(out - ref)))
    assert jnp.allclose(out, ref, atol=2e-3, rtol=2e-3), f"max abs err {err}"

    print("KERNEL_OK")
</pallas_src>

<mosaic_0001>
module attributes {stable_mosaic.version = 11 : i64} {
  func.func @_bn_lrelu_kernel(%arg0: i32, %arg1: i32, %arg2: i32, %arg3: memref<1x256x128xf32, #tpu.memory_space<vmem>>, %arg4: memref<1x128xf32, #tpu.memory_space<vmem>>, %arg5: memref<1x128xf32, #tpu.memory_space<vmem>>, %arg6: memref<1x256x128xf32, #tpu.memory_space<vmem>>) attributes {dimension_semantics = [#tpu.dimension_semantics<parallel>, #tpu.dimension_semantics<parallel>, #tpu.dimension_semantics<parallel>], iteration_bounds = array<i64: 2, 1, 1>, scalar_prefetch = 0 : i64, scratch_operands = 0 : i64, tpu.core_type = #tpu.core_type<tc>, window_params = [{transform_indices = @transform_0, window_bounds = array<i64: 1, 256, 128>}, {transform_indices = @transform_1, window_bounds = array<i64: 1, 128>}, {transform_indices = @transform_2, window_bounds = array<i64: 1, 128>}, {transform_indices = @transform_3, window_bounds = array<i64: 1, 256, 128>}]} {
    %c0 = arith.constant 0 : index
    %c0_0 = arith.constant 0 : index
    %c0_1 = arith.constant 0 : index
    %0 = vector.load %arg3[%c0, %c0_0, %c0_1] : memref<1x256x128xf32, #tpu.memory_space<vmem>>, vector<1x256x128xf32>
    %c0_2 = arith.constant 0 : index
    %c0_3 = arith.constant 0 : index
    %1 = vector.load %arg4[%c0_2, %c0_3] : memref<1x128xf32, #tpu.memory_space<vmem>>, vector<1x128xf32>
    %2 = vector.shape_cast %1 : vector<1x128xf32> to vector<1x1x128xf32>
    %3 = vector.broadcast %2 : vector<1x1x128xf32> to vector<1x256x128xf32>
    %4 = arith.mulf %0, %3 : vector<1x256x128xf32>
    %c0_4 = arith.constant 0 : index
    %c0_5 = arith.constant 0 : index
    %5 = vector.load %arg5[%c0_4, %c0_5] : memref<1x128xf32, #tpu.memory_space<vmem>>, vector<1x128xf32>
    %6 = vector.shape_cast %5 : vector<1x128xf32> to vector<1x1x128xf32>
    %7 = vector.broadcast %6 : vector<1x1x128xf32> to vector<1x256x128xf32>
    %8 = arith.addf %4, %7 : vector<1x256x128xf32>
    %cst = arith.constant 0.000000e+00 : f32
    %9 = vector.broadcast %cst : f32 to vector<1x256x128xf32>
    %10 = arith.cmpf ogt, %8, %9 : vector<1x256x128xf32>
    %cst_6 = arith.constant 2.000000e-01 : f32
    %11 = vector.broadcast %cst_6 : f32 to vector<1x256x128xf32>
    %12 = arith.mulf %11, %8 : vector<1x256x128xf32>
    %13 = arith.select %10, %8, %12 : vector<1x256x128xi1>, vector<1x256x128xf32>
    %c0_7 = arith.constant 0 : index
    %c0_8 = arith.constant 0 : index
    %c0_9 = arith.constant 0 : index
    %14 = vector.load %arg6[%c0_7, %c0_8, %c0_9] : memref<1x256x128xf32, #tpu.memory_space<vmem>>, vector<1x256x128xf32>
    tpu.vector_store %arg6[%c0_7, %c0_8, %c0_9], %13 {strides = array<i32>} : memref<1x256x128xf32, #tpu.memory_space<vmem>>, vector<1x256x128xf32>,
    return
  }
  func.func @transform_0(%arg0: i32, %arg1: i32, %arg2: i32) -> (i32, i32, i32) {
    %c0_i32 = arith.constant 0 : i32
    return %arg0, %arg2, %arg1 : i32, i32, i32
  }
  func.func @transform_1(%arg0: i32, %arg1: i32, %arg2: i32) -> (i32, i32) {
    %c0_i32 = arith.constant 0 : i32
    %c0_i32_0 = arith.constant 0 : i32
    return %c0_i32, %arg1 : i32, i32
  }
  func.func @transform_2(%arg0: i32, %arg1: i32, %arg2: i32) -> (i32, i32) {
    %c0_i32 = arith.constant 0 : i32
    %c0_i32_0 = arith.constant 0 : i32
    return %c0_i32, %arg1 : i32, i32
  }
  func.func @transform_3(%arg0: i32, %arg1: i32, %arg2: i32) -> (i32, i32, i32) {
    %c0_i32 = arith.constant 0 : i32
    return %arg0, %arg2, %arg1 : i32, i32, i32
  }
}

module attributes {stable_mosaic.version = 11 : i64} {
  func.func @_conv_stats_kernel(%arg0: i32, %arg1: i32, %arg2: i32, %arg3: memref<1x256x36xbf16, #tpu.memory_space<vmem>>, %arg4: memref<36x128xbf16, #tpu.memory_space<vmem>>, %arg5: memref<1x256x128xf32, #tpu.memory_space<vmem>>, %arg6: memref<1x1x128xf32, #tpu.memory_space<vmem>>, %arg7: memref<1x1x128xf32, #tpu.memory_space<vmem>>) attributes {dimension_semantics = [#tpu.dimension_semantics<parallel>, #tpu.dimension_semantics<parallel>, #tpu.dimension_semantics<arbitrary>], iteration_bounds = array<i64: 2, 1, 1>, scalar_prefetch = 0 : i64, scratch_operands = 0 : i64, tpu.core_type = #tpu.core_type<tc>, window_params = [{transform_indices = @transform_0, window_bounds = array<i64: 1, 256, 36>}, {transform_indices = @transform_1, window_bounds = array<i64: 36, 128>}, {transform_indices = @transform_2, window_bounds = array<i64: 1, 256, 128>}, {transform_indices = @transform_3, window_bounds = array<i64: 1, 1, 128>}, {transform_indices = @transform_4, window_bounds = array<i64: 1, 1, 128>}]} {
    %c0_i32 = arith.constant 0 : i32
    %0 = arith.cmpi eq, %arg2, %c0_i32 : i32
    %1 = arith.extui %0 : i1 to i32
    %c0_i32_0 = arith.constant 0 : i32
    %2 = arith.cmpi ne, %1, %c0_i32_0 : i32
    scf.if %2 {
      %cst_22 = arith.constant 0.000000e+00 : f32
      %22 = vector.broadcast %cst_22 : f32 to vector<1x1x128xf32>
      %c0_23 = arith.constant 0 : index
      %c0_24 = arith.constant 0 : index
      %c0_25 = arith.constant 0 : index
      %23 = vector.load %arg6[%c0_23, %c0_24, %c0_25] : memref<1x1x128xf32, #tpu.memory_space<vmem>>, vector<1x1x128xf32>
      tpu.vector_store %arg6[%c0_23, %c0_24, %c0_25], %22 {strides = array<i32>} : memref<1x1x128xf32, #tpu.memory_space<vmem>>, vector<1x1x128xf32>,
      %cst_26 = arith.constant 0.000000e+00 : f32
      %24 = vector.broadcast %cst_26 : f32 to vector<1x1x128xf32>
      %c0_27 = arith.constant 0 : index
      %c0_28 = arith.constant 0 : index
      %c0_29 = arith.constant 0 : index
      %25 = vector.load %arg7[%c0_27, %c0_28, %c0_29] : memref<1x1x128xf32, #tpu.memory_space<vmem>>, vector<1x1x128xf32>
      tpu.vector_store %arg7[%c0_27, %c0_28, %c0_29], %24 {strides = array<i32>} : memref<1x1x128xf32, #tpu.memory_space<vmem>>, vector<1x1x128xf32>,
    } else {
    }
    %c0 = arith.constant 0 : index
    %c0_1 = arith.constant 0 : index
    %c0_2 = arith.constant 0 : index
    %3 = vector.load %arg3[%c0, %c0_1, %c0_2] : memref<1x256x36xbf16, #tpu.memory_space<vmem>>, vector<1x256x36xbf16>
    %4 = vector.shape_cast %3 : vector<1x256x36xbf16> to vector<256x36xbf16>
    %c0_3 = arith.constant 0 : index
    %c0_4 = arith.constant 0 : index
    %5 = vector.load %arg4[%c0_3, %c0_4] : memref<36x128xbf16, #tpu.memory_space<vmem>>, vector<36x128xbf16>
    %cst = arith.constant dense<0.000000e+00> : vector<256x128xf32>
    %6 = tpu.matmul %4, %5, %cst {dimension_numbers = #tpu.dot_dimension_numbers<[1], [0], [0], [1], [0, 0, 1, 1], [], []>} : vector<256x36xbf16>, vector<36x128xbf16>, vector<256x128xf32> -> vector<256x128xf32>
    %7 = vector.shape_cast %6 : vector<256x128xf32> to vector<1x256x128xf32>
    %c0_5 = arith.constant 0 : index
    %c0_6 = arith.constant 0 : index
    %c0_7 = arith.constant 0 : index
    %8 = vector.load %arg5[%c0_5, %c0_6, %c0_7] : memref<1x256x128xf32, #tpu.memory_space<vmem>>, vector<1x256x128xf32>
    tpu.vector_store %arg5[%c0_5, %c0_6, %c0_7], %7 {strides = array<i32>} : memref<1x256x128xf32, #tpu.memory_space<vmem>>, vector<1x256x128xf32>,
    %c0_8 = arith.constant 0 : index
    %c0_9 = arith.constant 0 : index
    %c0_10 = arith.constant 0 : index
    %9 = vector.load %arg6[%c0_8, %c0_9, %c0_10] : memref<1x1x128xf32, #tpu.memory_space<vmem>>, vector<1x1x128xf32>
    %cst_11 = arith.constant dense<0.000000e+00> : vector<128xf32>
    %10 = vector.multi_reduction <add>, %6, %cst_11 [0] : vector<256x128xf32> to vector<128xf32>
    %11 = vector.shape_cast %10 : vector<128xf32> to vector<1x128xf32>
    %12 = vector.shape_cast %11 : vector<1x128xf32> to vector<1x1x128xf32>
    %13 = arith.addf %9, %12 : vector<1x1x128xf32>
    %c0_12 = arith.constant 0 : index
    %c0_13 = arith.constant 0 : index
    %c0_14 = arith.constant 0 : index
    %14 = vector.load %arg6[%c0_12, %c0_13, %c0_14] : memref<1x1x128xf32, #tpu.memory_space<vmem>>, vector<1x1x128xf32>
    tpu.vector_store %arg6[%c0_12, %c0_13, %c0_14], %13 {strides = array<i32>} : memref<1x1x128xf32, #tpu.memory_space<vmem>>, vector<1x1x128xf32>,
    %c0_15 = arith.constant 0 : index
    %c0_16 = arith.constant 0 : index
    %c0_17 = arith.constant 0 : index
    %15 = vector.load %arg7[%c0_15, %c0_16, %c0_17] : memref<1x1x128xf32, #tpu.memory_space<vmem>>, vector<1x1x128xf32>
    %16 = arith.mulf %6, %6 : vector<256x128xf32>
    %cst_18 = arith.constant dense<0.000000e+00> : vector<128xf32>
    %17 = vector.multi_reduction <add>, %16, %cst_18 [0] : vector<256x128xf32> to vector<128xf32>
    %18 = vector.shape_cast %17 : vector<128xf32> to vector<1x128xf32>
    %19 = vector.shape_cast %18 : vector<1x128xf32> to vector<1x1x128xf32>
    %20 = arith.addf %15, %19 : vector<1x1x128xf32>
    %c0_19 = arith.constant 0 : index
    %c0_20 = arith.constant 0 : index
    %c0_21 = arith.constant 0 : index
    %21 = vector.load %arg7[%c0_19, %c0_20, %c0_21] : memref<1x1x128xf32, #tpu.memory_space<vmem>>, vector<1x1x128xf32>
    tpu.vector_store %arg7[%c0_19, %c0_20, %c0_21], %20 {strides = array<i32>} : memref<1x1x128xf32, #tpu.memory_space<vmem>>, vector<1x1x128xf32>,
    return
  }
  func.func @transform_0(%arg0: i32, %arg1: i32, %arg2: i32) -> (i32, i32, i32) {
    %c0_i32 = arith.constant 0 : i32
    %c0_i32_0 = arith.constant 0 : i32
    return %arg0, %arg2, %c0_i32 : i32, i32, i32
  }
  func.func @transform_1(%arg0: i32, %arg1: i32, %arg2: i32) -> (i32, i32) {
    %c0_i32 = arith.constant 0 : i32
    %c0_i32_0 = arith.constant 0 : i32
    return %c0_i32, %arg1 : i32, i32
  }
  func.func @transform_2(%arg0: i32, %arg1: i32, %arg2: i32) -> (i32, i32, i32) {
    %c0_i32 = arith.constant 0 : i32
    return %arg0, %arg2, %arg1 : i32, i32, i32
  }
  func.func @transform_3(%arg0: i32, %arg1: i32, %arg2: i32) -> (i32, i32, i32) {
    %c0_i32 = arith.constant 0 : i32
    %c0_i32_0 = arith.constant 0 : i32
    return %arg0, %c0_i32, %arg1 : i32, i32, i32
  }
  func.func @transform_4(%arg0: i32, %arg1: i32, %arg2: i32) -> (i32, i32, i32) {
    %c0_i32 = arith.constant 0 : i32
    %c0_i32_0 = arith.constant 0 : i32
    return %arg0, %c0_i32, %arg1 : i32, i32, i32
  }
}

</mosaic_0001>

<llo_original>
// kernel: vgg_layer_forward.3
$region0: #{vgg_layer_forward.3}
  #allocation0 [shape = 'u32[]', space=smem, size = 0x4, offset = 0x4, fixed_abs, tag = 'smem constant byte address 0x4 - core index']
  #allocation1 [shape = 'u32[144,128]{1,0:T(1,128)}', space=vmem, size = 0x12000, scoped, tag = 'internal scratch']
  %s0 = inlined_call_operand.vmem [shape: f32[2,256,128], index: 0, kind: input, shape index: {}, may-alias: {0,3}]
  %s1 = inlined_call_operand.vmem [shape: f32[1,128], index: 1, kind: input, shape index: {}]
  %s2 = inlined_call_operand.vmem [shape: f32[1,128], index: 2, kind: input, shape index: {}]
  %s3 = inlined_call_operand.vmem [shape: f32[2,256,128], index: 3, kind: output, shape index: {}, may-alias: {0,3}]
  %s4 = sld [smem:[#allocation0]]
  $region45: #{vgg_layer_forward.3} parent=0
    _
  %s6 = ssub.s32 1, %s4
  %s7 = scalar_select 0, %s6, %s4
  loop: start=0, step=1, limit=4
  $region2: #{vgg_layer_forward.3} parent=0 // loop_pre_header
    _
  $region3: #{vgg_layer_forward.3} parent=0 // loop_header
    %s9 = sphi 0, %s13
    %p10 = scmp.ge.s32.totalorder %s9, 4
    %s16 = sphi 0, %s35
    %s17 = sphi 0, %s31
    %s18 = sphi 0, %s27
    %s19 = sphi 0, %s16
    %s20 = sphi 0, %s17
    %s21 = sphi 0, %s18
    %s22 = sphi 0, %s19
    %s23 = sphi 0, %s20
    %s24 = sphi 0, %s21
    %s42 = sphi 0, %s44
    %s45 = sphi 0, %s42
    %s46 = sphi 0, %s45
    %s62 = sphi 0, %s46
    %s68 = sphi 0, %s70
    %s71 = sphi 0, %s68
    %s72 = sphi 0, %s71
    %s88 = sphi 0, %s72
    %s94 = sphi 0, %s96
    %s97 = sphi 0, %s94
    %s98 = sphi 0, %s97
    %s114 = sphi 0, %s98
    %s124 = sphi 0, %s126
    %s127 = sphi 0, %s124
    %s128 = sphi 0, %s127
    %s144 = sphi 0, %s128
  $region4: #{vgg_layer_forward.3} parent=0 // loop_header_branch
    %12 = sbr.rel (%p10) target = $region8
  $region5: #{vgg_layer_forward.3} parent=0 // loop_body
    %s14 = ssub.s32 %s9, 1
    %s15 = ssub.s32 %s9, 2
    %s25 = sadd.s32 1, %s18
    %p26 = scmp.ge.s32.totalorder %s25, 1
    %s27 = scalar_select %p26, 0, %s25
    %s28 = sadd.s32 1, %s17
    %s29 = scalar_select %p26, %s28, %s17
    %p30 = scmp.ge.s32.totalorder %s29, 1
    %s31 = scalar_select %p30, 0, %s29
    %s32 = sadd.s32 1, %s16
    %s33 = scalar_select %p30, %s32, %s16
    %p34 = scmp.ge.s32.totalorder %s33, 2
    %s35 = scalar_select %p34, 0, %s33
    %s36 = ssub.s32 %s16, %s35
    %s37 = ssub.s32 %s18, %s27
    %s38 = sor.u32 %s36, %s37
    %s39 = ssub.s32 %s17, %s31
    %s40 = sor.u32 %s38, %s39
    %p41 = scmp.eq.s32.totalorder %s40, 0
    %s43 = sadd.s32 %s42, 1
    %s44 = scalar_select %p41, %s42, %s43
    %p47 = pneg %p41
    %p48 = scmp.eq.s32.totalorder %s9, 1
    %p49 = por %p47, %p48
    %p50 = scmp.ne.s32.totalorder %s42, %s45
    %p51 = scmp.eq.s32.totalorder %s9, 0
    %p52 = por %p50, %p51
    %p53 = scmp.ne.s32.totalorder %s42, %s45
    %p54 = scmp.eq.s32.totalorder %s14, 1
    %p55 = por %p53, %p54
    %p56 = scmp.ne.s32.totalorder %s45, %s46
    %p57 = scmp.eq.s32.totalorder %s14, 0
    %p58 = por %p56, %p57
    %p59 = scmp.ne.s32.totalorder %s45, %s46
    %p60 = scmp.eq.s32.totalorder %s15, 1
    %p61 = por %p59, %p60
    %p63 = scmp.ne.s32.totalorder %s46, %s62
    %p64 = scmp.eq.s32.totalorder %s15, 0
    %p65 = por %p63, %p64
    %s66 = ssub.s32 %s17, %s31
    %p67 = scmp.eq.s32.totalorder %s66, 0
    %s69 = sadd.s32 %s68, 1
    %s70 = scalar_select %p67, %s68, %s69
    %p73 = pneg %p67
    %p74 = scmp.eq.s32.totalorder %s9, 1
    %p75 = por %p73, %p74
    %p76 = scmp.ne.s32.totalorder %s68, %s71
    %p77 = scmp.eq.s32.totalorder %s9, 0
    %p78 = por %p76, %p77
    %p79 = scmp.ne.s32.totalorder %s68, %s71
    %p80 = scmp.eq.s32.totalorder %s14, 1
    %p81 = por %p79, %p80
    %p82 = scmp.ne.s32.totalorder %s71, %s72
    %p83 = scmp.eq.s32.totalorder %s14, 0
    %p84 = por %p82, %p83
    %p85 = scmp.ne.s32.totalorder %s71, %s72
    %p86 = scmp.eq.s32.totalorder %s15, 1
    %p87 = por %p85, %p86
    %p89 = scmp.ne.s32.totalorder %s72, %s88
    %p90 = scmp.eq.s32.totalorder %s15, 0
    %p91 = por %p89, %p90
    %s92 = ssub.s32 %s17, %s31
    %p93 = scmp.eq.s32.totalorder %s92, 0
    %s95 = sadd.s32 %s94, 1
    %s96 = scalar_select %p93, %s94, %s95
    %p99 = pneg %p93
    %p100 = scmp.eq.s32.totalorder %s9, 1
    %p101 = por %p99, %p100
    %p102 = scmp.ne.s32.totalorder %s94, %s97
    %p103 = scmp.eq.s32.totalorder %s9, 0
    %p104 = por %p102, %p103
    %p105 = scmp.ne.s32.totalorder %s94, %s97
    %p106 = scmp.eq.s32.totalorder %s14, 1
    %p107 = por %p105, %p106
    %p108 = scmp.ne.s32.totalorder %s97, %s98
    %p109 = scmp.eq.s32.totalorder %s14, 0
    %p110 = por %p108, %p109
    %p111 = scmp.ne.s32.totalorder %s97, %s98
    %p112 = scmp.eq.s32.totalorder %s15, 1
    %p113 = por %p111, %p112
    %p115 = scmp.ne.s32.totalorder %s98, %s114
    %p116 = scmp.eq.s32.totalorder %s15, 0
    %p117 = por %p115, %p116
    %s118 = ssub.s32 %s16, %s35
    %s119 = ssub.s32 %s18, %s27
    %s120 = sor.u32 %s118, %s119
    %s121 = ssub.s32 %s17, %s31
    %s122 = sor.u32 %s120, %s121
    %p123 = scmp.eq.s32.totalorder %s122, 0
    %s125 = sadd.s32 %s124, 1
    %s126 = scalar_select %p123, %s124, %s125
    %p129 = pneg %p123
    %p130 = scmp.eq.s32.totalorder %s9, 1
    %p131 = por %p129, %p130
    %p132 = scmp.ne.s32.totalorder %s124, %s127
    %p133 = scmp.eq.s32.totalorder %s9, 0
    %p134 = por %p132, %p133
    %p135 = scmp.ne.s32.totalorder %s124, %s127
    %p136 = scmp.eq.s32.totalorder %s14, 1
    %p137 = por %p135, %p136
    %p138 = scmp.ne.s32.totalorder %s127, %s128
    %p139 = scmp.eq.s32.totalorder %s14, 0
    %p140 = por %p138, %p139
    %p141 = scmp.ne.s32.totalorder %s127, %s128
    %p142 = scmp.eq.s32.totalorder %s15, 1
    %p143 = por %p141, %p142
    %p145 = scmp.ne.s32.totalorder %s128, %s144
    %p146 = scmp.eq.s32.totalorder %s15, 0
    %p147 = por %p145, %p146
    %p148 = scmp.le.s32.totalorder 1, %s9
    %p149 = scmp.lt.s32.totalorder %s9, 3
    %p150 = pnand %p148, %p149
    %p151 = pneg %p150
    // Predicated region
    $region9: #{vgg_layer_forward.3} parent=5 // pred_check
      _
    $region10: #{vgg_layer_forward.3} parent=5 // pred_check_branch
      %153 = sbr.rel (%p150) target = $region12
    $region11: #{vgg_layer_forward.3} parent=5 // pred_region
      %s154 = ssub.s32 %s9, 1
      // Predicated region
      $region13: #{vgg_layer_forward.3} parent=11 // pred_check
        %p155 = pneg %p84
      $region14: #{vgg_layer_forward.3} parent=11 // pred_check_branch
        %157 = sbr.rel (%p155) target = $region16
      $region15: #{vgg_layer_forward.3} parent=11 // pred_region
        %p158 = scmp.lt.s32.totalorder %s20, 0
        %s159 = scalar_select %p158, %s20, 0
        %s160 = scalar_lea.vmem %s1, %s159
      $region16: #{vgg_layer_forward.3} parent=11 // pred_fallthru
        _
      // Predicated region
      $region17: #{vgg_layer_forward.3} parent=11 // pred_check
        %p161 = pneg %p110
      $region18: #{vgg_layer_forward.3} parent=11 // pred_check_branch
        %163 = sbr.rel (%p161) target = $region20
      $region19: #{vgg_layer_forward.3} parent=11 // pred_region
        %p164 = scmp.lt.s32.totalorder %s20, 0
        %s165 = scalar_select %p164, %s20, 0
        %s166 = scalar_lea.vmem %s2, %s165
      $region20: #{vgg_layer_forward.3} parent=11 // pred_fallthru
        _
    $region12: #{vgg_layer_forward.3} parent=5 // pred_fallthru
      _
    %p167 = scmp.lt.s32.totalorder %s9, 2
    // Predicated region
    $region21: #{vgg_layer_forward.3} parent=5 // pred_check
      %p168 = pneg %p167
    $region22: #{vgg_layer_forward.3} parent=5 // pred_check_branch
      %170 = sbr.rel (%p168) target = $region24
    $region23: #{vgg_layer_forward.3} parent=5 // pred_region
      // Predicated region
      $region25: #{vgg_layer_forward.3} parent=23 // pred_check
        %p171 = pneg %p52
      $region26: #{vgg_layer_forward.3} parent=23 // pred_check_branch
        %173 = sbr.rel (%p171) target = $region28
      $region27: #{vgg_layer_forward.3} parent=23 // pred_region
        %s174 = smul.u32 32, %s18
        %p175 = scmp.lt.s32.totalorder %s16, 1
        %s176 = scalar_select %p175, %s16, 1
        %p177 = scmp.lt.s32.totalorder %s174, 31
        %s178 = scalar_select %p177, %s174, 31
        %p179 = scmp.lt.s32.totalorder %s17, 0
        %s180 = scalar_select %p179, %s17, 0
        %s181 = sadd.s32 %s180, %s178
        %s182 = smul.addr %s176, 32
        %s183 = sadd.s32 %s181, %s182
        %s184 = smul.addr %s183, 8
        %s185 = scalar_lea.vmem %s0, %s184
        %s186 = smul.u32 32, %s18
      $region28: #{vgg_layer_forward.3} parent=23 // pred_fallthru
        _
    $region24: #{vgg_layer_forward.3} parent=5 // pred_fallthru
      _
    %p187 = scmp.le.s32.totalorder 1, %s9
    %p188 = scmp.lt.s32.totalorder %s9, 3
    %p189 = pnand %p187, %p188
    %p190 = pneg %p189
    // Predicated region
    $region29: #{vgg_layer_forward.3} parent=5 // pred_check
      _
    $region30: #{vgg_layer_forward.3} parent=5 // pred_check_branch
      %192 = sbr.rel (%p189) target = $region32
    $region31: #{vgg_layer_forward.3} parent=5 // pred_region
      %s193 = ssub.s32 %s9, 1
      %s194 = smul.u32 32, %s21
      %p195 = scmp.lt.s32.totalorder %s19, 1
      %s196 = scalar_select %p195, %s19, 1
      %p197 = scmp.lt.s32.totalorder %s194, 31
      %s198 = scalar_select %p197, %s194, 31
      %p199 = scmp.lt.s32.totalorder %s20, 0
      %s200 = scalar_select %p199, %s20, 0
      %s201 = sadd.s32 %s200, %s198
      %s202 = smul.addr %s196, 32
      %s203 = sadd.s32 %s201, %s202
      %s204 = smul.addr %s203, 8
      %s205 = scalar_lea.vmem %s0, %s204
      %p206 = pneg %p58
      %p207 = pneg %p55
      %p208 = scmp.lt.s32.totalorder %s20, 0
      %s209 = scalar_select %p208, %s20, 0
      %s210 = scalar_lea.vmem %s1, %s209
      %p211 = pneg %p84
      %p212 = pneg %p81
      %p213 = scmp.lt.s32.totalorder %s20, 0
      %s214 = scalar_select %p213, %s20, 0
      %s215 = scalar_lea.vmem %s2, %s214
      %p216 = pneg %p110
      %p217 = pneg %p107
      %p218 = pneg %p140
      %p219 = pneg %p137
      %s220 = smul.u32 32, %s21
      %p221 = scmp.lt.s32.totalorder %s19, 1
      %s222 = scalar_select %p221, %s19, 1
      %p223 = scmp.lt.s32.totalorder %s220, 31
      %s224 = scalar_select %p223, %s220, 31
      %p225 = scmp.lt.s32.totalorder %s20, 0
      %s226 = scalar_select %p225, %s20, 0
      %s227 = sadd.s32 %s226, %s224
      %s228 = smul.addr %s222, 32
      %s229 = sadd.s32 %s227, %s228
      %s230 = smul.addr %s229, 8
      %s231 = scalar_lea.vmem %s3, %s230
      %s232 = smul.u32 32, %s21
      %p233 = scmp.lt.s32.totalorder %s19, 1
      %s234 = scalar_select %p233, %s19, 1
      %p235 = scmp.lt.s32.totalorder %s232, 31
      %s236 = scalar_select %p235, %s232, 31
      %p237 = scmp.lt.s32.totalorder %s20, 0
      %s238 = scalar_select %p237, %s20, 0
      %s239 = sadd.s32 %s238, %s236
      %s240 = smul.addr %s234, 32
      %s241 = sadd.s32 %s239, %s240
      %s242 = smul.addr %s241, 8
      %s243 = scalar_lea.vmem %s0, %s242
      %s244 = smul.u32 32, %s21
      %p245 = scmp.lt.s32.totalorder %s20, 0
      %s246 = scalar_select %p245, %s20, 0
      %s247 = scalar_lea.vmem %s1, %s246
      %p248 = scmp.lt.s32.totalorder %s20, 0
      %s249 = scalar_select %p248, %s20, 0
      %s250 = scalar_lea.vmem %s2, %s249
      %s251 = smul.u32 32, %s21
      %p252 = scmp.lt.s32.totalorder %s19, 1
      %s253 = scalar_select %p252, %s19, 1
      %p254 = scmp.lt.s32.totalorder %s251, 31
      %s255 = scalar_select %p254, %s251, 31
      %p256 = scmp.lt.s32.totalorder %s20, 0
      %s257 = scalar_select %p256, %s20, 0
      %s258 = sadd.s32 %s257, %s255
      %s259 = smul.addr %s253, 32
      %s260 = sadd.s32 %s258, %s259
      %s261 = smul.addr %s260, 8
      %s262 = scalar_lea.vmem %s3, %s261
      %s263 = smul.u32 32, %s21
      %v264 = vld [vmem:[%s243] sm:$0xff]
      %v265 = vld [vmem:[%s243 + $0x8] sm:$0xff]
      %v266 = vld [vmem:[%s243 + $0x10] sm:$0xff]
      %v267 = vld [vmem:[%s243 + $0x18] sm:$0xff]
      %v268 = vld [vmem:[%s243 + $0x20] sm:$0xff]
      %v269 = vld [vmem:[%s243 + $0x28] sm:$0xff]
      %v270 = vld [vmem:[%s243 + $0x30] sm:$0xff]
      %v271 = vld [vmem:[%s243 + $0x38] sm:$0xff]
      %v272 = vld [vmem:[%s243 + $0x40] sm:$0xff]
      %v273 = vld [vmem:[%s243 + $0x48] sm:$0xff]
      %v274 = vld [vmem:[%s243 + $0x50] sm:$0xff]
      %v275 = vld [vmem:[%s243 + $0x58] sm:$0xff]
      %v276 = vld [vmem:[%s243 + $0x60] sm:$0xff]
      %v277 = vld [vmem:[%s243 + $0x68] sm:$0xff]
      %v278 = vld [vmem:[%s243 + $0x70] sm:$0xff]
      %v279 = vld [vmem:[%s243 + $0x78] sm:$0xff]
      %v280 = vld [vmem:[%s243 + $0x80] sm:$0xff]
      %v281 = vld [vmem:[%s243 + $0x88] sm:$0xff]
      %v282 = vld [vmem:[%s243 + $0x90] sm:$0xff]
      %v283 = vld [vmem:[%s243 + $0x98] sm:$0xff]
      %v284 = vld [vmem:[%s243 + $0xa0] sm:$0xff]
      %v285 = vld [vmem:[%s243 + $0xa8] sm:$0xff]
      %v286 = vld [vmem:[%s243 + $0xb0] sm:$0xff]
      %v287 = vld [vmem:[%s243 + $0xb8] sm:$0xff]
      %v288 = vld [vmem:[%s243 + $0xc0] sm:$0xff]
      %v289 = vld [vmem:[%s243 + $0xc8] sm:$0xff]
      %v290 = vld [vmem:[%s243 + $0xd0] sm:$0xff]
      %v291 = vld [vmem:[%s243 + $0xd8] sm:$0xff]
      %v292 = vld [vmem:[%s243 + $0xe0] sm:$0xff]
      %v293 = vld [vmem:[%s243 + $0xe8] sm:$0xff]
      %v294 = vld [vmem:[%s243 + $0xf0] sm:$0xff]
      %v295 = vld [vmem:[%s243 + $0xf8] sm:$0xff]
      %v296 = vld [vmem:[%s247] sm:$0x1]
      %v298 = vlaneseq
      %v299 = vshrl.u32 %v298, 7
      %v300 = vsub.s32 0, %v299
      %v301 = vrot.slane %v296, %v300
      %v303 = vmul.f32 %v264, %v301
      %v304 = vmul.f32 %v265, %v301
      %v305 = vmul.f32 %v266, %v301
      %v306 = vmul.f32 %v267, %v301
      %v307 = vmul.f32 %v268, %v301
      %v308 = vmul.f32 %v269, %v301
      %v309 = vmul.f32 %v270, %v301
      %v310 = vmul.f32 %v271, %v301
      %v311 = vmul.f32 %v272, %v301
      %v312 = vmul.f32 %v273, %v301
      %v313 = vmul.f32 %v274, %v301
      %v314 = vmul.f32 %v275, %v301
      %v315 = vmul.f32 %v276, %v301
      %v316 = vmul.f32 %v277, %v301
      %v317 = vmul.f32 %v278, %v301
      %v318 = vmul.f32 %v279, %v301
      %v319 = vmul.f32 %v280, %v301
      %v320 = vmul.f32 %v281, %v301
      %v321 = vmul.f32 %v282, %v301
      %v322 = vmul.f32 %v283, %v301
      %v323 = vmul.f32 %v284, %v301
      %v324 = vmul.f32 %v285, %v301
      %v325 = vmul.f32 %v286, %v301
      %v326 = vmul.f32 %v287, %v301
      %v327 = vmul.f32 %v288, %v301
      %v328 = vmul.f32 %v289, %v301
      %v329 = vmul.f32 %v290, %v301
      %v330 = vmul.f32 %v291, %v301
      %v331 = vmul.f32 %v292, %v301
      %v332 = vmul.f32 %v293, %v301
      %v333 = vmul.f32 %v294, %v301
      %v334 = vmul.f32 %v295, %v301
      %v335 = vld [vmem:[%s250] sm:$0x1]
      %v337 = vlaneseq
      %v338 = vshrl.u32 %v337, 7
      %v339 = vsub.s32 0, %v338
      %v340 = vrot.slane %v335, %v339
      %v342 = vadd.f32 %v303, %v340
      %v343 = vadd.f32 %v304, %v340
      %v344 = vadd.f32 %v305, %v340
      %v345 = vadd.f32 %v306, %v340
      %v346 = vadd.f32 %v307, %v340
      %v347 = vadd.f32 %v308, %v340
      %v348 = vadd.f32 %v309, %v340
      %v349 = vadd.f32 %v310, %v340
      %v350 = vadd.f32 %v311, %v340
      %v351 = vadd.f32 %v312, %v340
      %v352 = vadd.f32 %v313, %v340
      %v353 = vadd.f32 %v314, %v340
      %v354 = vadd.f32 %v315, %v340
      %v355 = vadd.f32 %v316, %v340
      %v356 = vadd.f32 %v317, %v340
      %v357 = vadd.f32 %v318, %v340
      %v358 = vadd.f32 %v319, %v340
      %v359 = vadd.f32 %v320, %v340
      %v360 = vadd.f32 %v321, %v340
      %v361 = vadd.f32 %v322, %v340
      %v362 = vadd.f32 %v323, %v340
      %v363 = vadd.f32 %v324, %v340
      %v364 = vadd.f32 %v325, %v340
      %v365 = vadd.f32 %v326, %v340
      %v366 = vadd.f32 %v327, %v340
      %v367 = vadd.f32 %v328, %v340
      %v368 = vadd.f32 %v329, %v340
      %v369 = vadd.f32 %v330, %v340
      %v370 = vadd.f32 %v331, %v340
      %v371 = vadd.f32 %v332, %v340
      %v372 = vadd.f32 %v333, %v340
      %v373 = vadd.f32 %v334, %v340
      %vm374 = vcmp.gt.f32.partialorder %v342, 0.0
      %vm375 = vcmp.gt.f32.partialorder %v343, 0.0
      %vm376 = vcmp.gt.f32.partialorder %v344, 0.0
      %vm377 = vcmp.gt.f32.partialorder %v345, 0.0
      %vm378 = vcmp.gt.f32.partialorder %v346, 0.0
      %vm379 = vcmp.gt.f32.partialorder %v347, 0.0
      %vm380 = vcmp.gt.f32.partialorder %v348, 0.0
      %vm381 = vcmp.gt.f32.partialorder %v349, 0.0
      %vm382 = vcmp.gt.f32.partialorder %v350, 0.0
      %vm383 = vcmp.gt.f32.partialorder %v351, 0.0
      %vm384 = vcmp.gt.f32.partialorder %v352, 0.0
      %vm385 = vcmp.gt.f32.partialorder %v353, 0.0
      %vm386 = vcmp.gt.f32.partialorder %v354, 0.0
      %vm387 = vcmp.gt.f32.partialorder %v355, 0.0
      %vm388 = vcmp.gt.f32.partialorder %v356, 0.0
      %vm389 = vcmp.gt.f32.partialorder %v357, 0.0
      %vm390 = vcmp.gt.f32.partialorder %v358, 0.0
      %vm391 = vcmp.gt.f32.partialorder %v359, 0.0
      %vm392 = vcmp.gt.f32.partialorder %v360, 0.0
      %vm393 = vcmp.gt.f32.partialorder %v361, 0.0
      %vm394 = vcmp.gt.f32.partialorder %v362, 0.0
      %vm395 = vcmp.gt.f32.partialorder %v363, 0.0
      %vm396 = vcmp.gt.f32.partialorder %v364, 0.0
      %vm397 = vcmp.gt.f32.partialorder %v365, 0.0
      %vm398 = vcmp.gt.f32.partialorder %v366, 0.0
      %vm399 = vcmp.gt.f32.partialorder %v367, 0.0
      %vm400 = vcmp.gt.f32.partialorder %v368, 0.0
      %vm401 = vcmp.gt.f32.partialorder %v369, 0.0
      %vm402 = vcmp.gt.f32.partialorder %v370, 0.0
      %vm403 = vcmp.gt.f32.partialorder %v371, 0.0
      %vm404 = vcmp.gt.f32.partialorder %v372, 0.0
      %vm405 = vcmp.gt.f32.partialorder %v373, 0.0
      %v406 = vmul.f32 %v342, 0.2
      %v407 = vmul.f32 %v343, 0.2
      %v408 = vmul.f32 %v344, 0.2
      %v409 = vmul.f32 %v345, 0.2
      %v410 = vmul.f32 %v346, 0.2
      %v411 = vmul.f32 %v347, 0.2
      %v412 = vmul.f32 %v348, 0.2
      %v413 = vmul.f32 %v349, 0.2
      %v414 = vmul.f32 %v350, 0.2
      %v415 = vmul.f32 %v351, 0.2
      %v416 = vmul.f32 %v352, 0.2
      %v417 = vmul.f32 %v353, 0.2
      %v418 = vmul.f32 %v354, 0.2
      %v419 = vmul.f32 %v355, 0.2
      %v420 = vmul.f32 %v356, 0.2
      %v421 = vmul.f32 %v357, 0.2
      %v422 = vmul.f32 %v358, 0.2
      %v423 = vmul.f32 %v359, 0.2
      %v424 = vmul.f32 %v360, 0.2
      %v425 = vmul.f32 %v361, 0.2
      %v426 = vmul.f32 %v362, 0.2
      %v427 = vmul.f32 %v363, 0.2
      %v428 = vmul.f32 %v364, 0.2
      %v429 = vmul.f32 %v365, 0.2
      %v430 = vmul.f32 %v366, 0.2
      %v431 = vmul.f32 %v367, 0.2
      %v432 = vmul.f32 %v368, 0.2
      %v433 = vmul.f32 %v369, 0.2
      %v434 = vmul.f32 %v370, 0.2
      %v435 = vmul.f32 %v371, 0.2
      %v436 = vmul.f32 %v372, 0.2
      %v437 = vmul.f32 %v373, 0.2
      %v438 = vsel %vm374, %v342, %v406
      %v439 = vsel %vm375, %v343, %v407
      %v440 = vsel %vm376, %v344, %v408
      %v441 = vsel %vm377, %v345, %v409
      %v442 = vsel %vm378, %v346, %v410
      %v443 = vsel %vm379, %v347, %v411
      %v444 = vsel %vm380, %v348, %v412
      %v445 = vsel %vm381, %v349, %v413
      %v446 = vsel %vm382, %v350, %v414
      %v447 = vsel %vm383, %v351, %v415
      %v448 = vsel %vm384, %v352, %v416
      %v449 = vsel %vm385, %v353, %v417
      %v450 = vsel %vm386, %v354, %v418
      %v451 = vsel %vm387, %v355, %v419
      %v452 = vsel %vm388, %v356, %v420
      %v453 = vsel %vm389, %v357, %v421
      %v454 = vsel %vm390, %v358, %v422
      %v455 = vsel %vm391, %v359, %v423
      %v456 = vsel %vm392, %v360, %v424
      %v457 = vsel %vm393, %v361, %v425
      %v458 = vsel %vm394, %v362, %v426
      %v459 = vsel %vm395, %v363, %v427
      %v460 = vsel %vm396, %v364, %v428
      %v461 = vsel %vm397, %v365, %v429
      %v462 = vsel %vm398, %v366, %v430
      %v463 = vsel %vm399, %v367, %v431
      %v464 = vsel %vm400, %v368, %v432
      %v465 = vsel %vm401, %v369, %v433
      %v466 = vsel %vm402, %v370, %v434
      %v467 = vsel %vm403, %v371, %v435
      %v468 = vsel %vm404, %v372, %v436
      %v469 = vsel %vm405, %v373, %v437
      %470 = vst [vmem:[%s262] sm:$0xff] %v438
      %471 = vst [vmem:[%s262 + $0x8] sm:$0xff] %v439
      %472 = vst [vmem:[%s262 + $0x10] sm:$0xff] %v440
      %473 = vst [vmem:[%s262 + $0x18] sm:$0xff] %v441
      %474 = vst [vmem:[%s262 + $0x20] sm:$0xff] %v442
      %475 = vst [vmem:[%s262 + $0x28] sm:$0xff] %v443
      %476 = vst [vmem:[%s262 + $0x30] sm:$0xff] %v444
      %477 = vst [vmem:[%s262 + $0x38] sm:$0xff] %v445
      %478 = vst [vmem:[%s262 + $0x40] sm:$0xff] %v446
      %479 = vst [vmem:[%s262 + $0x48] sm:$0xff] %v447
      %480 = vst [vmem:[%s262 + $0x50] sm:$0xff] %v448
      %481 = vst [vmem:[%s262 + $0x58] sm:$0xff] %v449
      %482 = vst [vmem:[%s262 + $0x60] sm:$0xff] %v450
      %483 = vst [vmem:[%s262 + $0x68] sm:$0xff] %v451
      %484 = vst [vmem:[%s262 + $0x70] sm:$0xff] %v452
      %485 = vst [vmem:[%s262 + $0x78] sm:$0xff] %v453
      %486 = vst [vmem:[%s262 + $0x80] sm:$0xff] %v454
      %487 = vst [vmem:[%s262 + $0x88] sm:$0xff] %v455
      %488 = vst [vmem:[%s262 + $0x90] sm:$0xff] %v456
      %489 = vst [vmem:[%s262 + $0x98] sm:$0xff] %v457
      %490 = vst [vmem:[%s262 + $0xa0] sm:$0xff] %v458
      %491 = vst [vmem:[%s262 + $0xa8] sm:$0xff] %v459
      %492 = vst [vmem:[%s262 + $0xb0] sm:$0xff] %v460
      %493 = vst [vmem:[%s262 + $0xb8] sm:$0xff] %v461
      %494 = vst [vmem:[%s262 + $0xc0] sm:$0xff] %v462
      %495 = vst [vmem:[%s262 + $0xc8] sm:$0xff] %v463
      %496 = vst [vmem:[%s262 + $0xd0] sm:$0xff] %v464
      %497 = vst [vmem:[%s262 + $0xd8] sm:$0xff] %v465
      %498 = vst [vmem:[%s262 + $0xe0] sm:$0xff] %v466
      %499 = vst [vmem:[%s262 + $0xe8] sm:$0xff] %v467
      %500 = vst [vmem:[%s262 + $0xf0] sm:$0xff] %v468
      %501 = vst [vmem:[%s262 + $0xf8] sm:$0xff] %v469
      %s502 = smul.u32 32, %s21
      %p503 = scmp.lt.s32.totalorder %s19, 1
      %s504 = scalar_select %p503, %s19, 1
      %p505 = scmp.lt.s32.totalorder %s502, 31
      %s506 = scalar_select %p505, %s502, 31
      %p507 = scmp.lt.s32.totalorder %s20, 0
      %s508 = scalar_select %p507, %s20, 0
      %s509 = sadd.s32 %s508, %s506
      %s510 = smul.addr %s504, 32
      %s511 = sadd.s32 %s509, %s510
      %s512 = smul.addr %s511, 8
      %s513 = scalar_lea.vmem %s3, %s512
      // Predicated region
      $region33: #{vgg_layer_forward.3} parent=31 // pred_check
        %p514 = pneg %p137
      $region34: #{vgg_layer_forward.3} parent=31 // pred_check_branch
        %516 = sbr.rel (%p514) target = $region36
      $region35: #{vgg_layer_forward.3} parent=31 // pred_region
        %s517 = smul.u32 32, %s21
      $region36: #{vgg_layer_forward.3} parent=31 // pred_fallthru
        _
    $region32: #{vgg_layer_forward.3} parent=5 // pred_fallthru
      _
    %p518 = scmp.le.s32.totalorder 2, %s9
    // Predicated region
    $region37: #{vgg_layer_forward.3} parent=5 // pred_check
      %p519 = pneg %p518
    $region38: #{vgg_layer_forward.3} parent=5 // pred_check_branch
      %521 = sbr.rel (%p519) target = $region40
    $region39: #{vgg_layer_forward.3} parent=5 // pred_region
      %s522 = ssub.s32 %s9, 2
      // Predicated region
      $region41: #{vgg_layer_forward.3} parent=39 // pred_check
        %p523 = pneg %p143
      $region42: #{vgg_layer_forward.3} parent=39 // pred_check_branch
        %525 = sbr.rel (%p523) target = $region44
      $region43: #{vgg_layer_forward.3} parent=39 // pred_region
        %s526 = smul.u32 32, %s24
        %p527 = scmp.lt.s32.totalorder %s22, 1
        %s528 = scalar_select %p527, %s22, 1
        %p529 = scmp.lt.s32.totalorder %s526, 31
        %s530 = scalar_select %p529, %s526, 31
        %p531 = scmp.lt.s32.totalorder %s23, 0
        %s532 = scalar_select %p531, %s23, 0
        %s533 = sadd.s32 %s532, %s530
        %s534 = smul.addr %s528, 32
        %s535 = sadd.s32 %s533, %s534
        %s536 = smul.addr %s535, 8
        %s537 = scalar_lea.vmem %s3, %s536
      $region44: #{vgg_layer_forward.3} parent=39 // pred_fallthru
        _
    $region40: #{vgg_layer_forward.3} parent=5 // pred_fallthru
      _
  $region6: #{vgg_layer_forward.3} parent=0 // loop_footer
    %s13 = sadd.s32 1, %s9
  $region7: #{vgg_layer_forward.3} parent=0 // loop_footer_branch
    %8 = sbr.rel target = $region3
  $region8: #{vgg_layer_forward.3} parent=0 // loop_exit
    _

// kernel: vgg_layer_forward.2
$region0: #{vgg_layer_forward.2}
  #allocation0 [shape = 'u32[]', space=smem, size = 0x4, offset = 0x4, fixed_abs, tag = 'smem constant byte address 0x4 - core index']
  #allocation1 [shape = 'u32[144,128]{1,0:T(1,128)}', space=vmem, size = 0x12000, scoped, tag = 'internal scratch']
  %s0 = inlined_call_operand.vmem [shape: bf16[2,256,36], index: 0, kind: input, shape index: {}]
  %s1 = inlined_call_operand.vmem [shape: bf16[36,128], index: 1, kind: input, shape index: {}]
  %s2 = inlined_call_operand.vmem [shape: f32[2,256,128], index: 2, kind: output, shape index: {0}]
  %s3 = inlined_call_operand.vmem [shape: f32[2,1,128], index: 3, kind: output, shape index: {1}]
  %s4 = inlined_call_operand.vmem [shape: f32[2,1,128], index: 4, kind: output, shape index: {2}]
  %5 = xla_tuple %s2, %s3, %s4
  %s6 = sld [smem:[#allocation0]]
  $region61: #{vgg_layer_forward.2} parent=0
    _
  %s8 = ssub.s32 1, %s6
  %s9 = scalar_select 0, %s8, %s6
  loop: start=0, step=1, limit=4
  $region2: #{vgg_layer_forward.2} parent=0 // loop_pre_header
    _
  $region3: #{vgg_layer_forward.2} parent=0 // loop_header
    %s11 = sphi 0, %s15
    %p12 = scmp.ge.s32.totalorder %s11, 4
    %s18 = sphi 0, %s37
    %s19 = sphi 0, %s33
    %s20 = sphi 0, %s29
    %s21 = sphi 0, %s18
    %s22 = sphi 0, %s19
    %s23 = sphi 0, %s20
    %s24 = sphi 0, %s21
    %s25 = sphi 0, %s22
    %s26 = sphi 0, %s23
    %s42 = sphi 0, %s44
    %s45 = sphi 0, %s42
    %s46 = sphi 0, %s45
    %s62 = sphi 0, %s46
    %s68 = sphi 0, %s70
    %s71 = sphi 0, %s68
    %s72 = sphi 0, %s71
    %s88 = sphi 0, %s72
    %s98 = sphi 0, %s100
    %s101 = sphi 0, %s98
    %s102 = sphi 0, %s101
    %s118 = sphi 0, %s102
    %s126 = sphi 0, %s128
    %s129 = sphi 0, %s126
    %s130 = sphi 0, %s129
    %s146 = sphi 0, %s130
    %s154 = sphi 0, %s156
    %s157 = sphi 0, %s154
    %s158 = sphi 0, %s157
    %s174 = sphi 0, %s158
  $region4: #{vgg_layer_forward.2} parent=0 // loop_header_branch
    %14 = sbr.rel (%p12) target = $region8
  $region5: #{vgg_layer_forward.2} parent=0 // loop_body
    %s16 = ssub.s32 %s11, 1
    %s17 = ssub.s32 %s11, 2
    %s27 = sadd.s32 1, %s20
    %p28 = scmp.ge.s32.totalorder %s27, 1
    %s29 = scalar_select %p28, 0, %s27
    %s30 = sadd.s32 1, %s19
    %s31 = scalar_select %p28, %s30, %s19
    %p32 = scmp.ge.s32.totalorder %s31, 1
    %s33 = scalar_select %p32, 0, %s31
    %s34 = sadd.s32 1, %s18
    %s35 = scalar_select %p32, %s34, %s18
    %p36 = scmp.ge.s32.totalorder %s35, 2
    %s37 = scalar_select %p36, 0, %s35
    %s38 = ssub.s32 %s18, %s37
    %s39 = ssub.s32 %s20, %s29
    %s40 = sor.u32 %s38, %s39
    %p41 = scmp.eq.s32.totalorder %s40, 0
    %s43 = sadd.s32 %s42, 1
    %s44 = scalar_select %p41, %s42, %s43
    %p47 = pneg %p41
    %p48 = scmp.eq.s32.totalorder %s11, 1
    %p49 = por %p47, %p48
    %p50 = scmp.ne.s32.totalorder %s42, %s45
    %p51 = scmp.eq.s32.totalorder %s11, 0
    %p52 = por %p50, %p51
    %p53 = scmp.ne.s32.totalorder %s42, %s45
    %p54 = scmp.eq.s32.totalorder %s16, 1
    %p55 = por %p53, %p54
    %p56 = scmp.ne.s32.totalorder %s45, %s46
    %p57 = scmp.eq.s32.totalorder %s16, 0
    %p58 = por %p56, %p57
    %p59 = scmp.ne.s32.totalorder %s45, %s46
    %p60 = scmp.eq.s32.totalorder %s17, 1
    %p61 = por %p59, %p60
    %p63 = scmp.ne.s32.totalorder %s46, %s62
    %p64 = scmp.eq.s32.totalorder %s17, 0
    %p65 = por %p63, %p64
    %s66 = ssub.s32 %s19, %s33
    %p67 = scmp.eq.s32.totalorder %s66, 0
    %s69 = sadd.s32 %s68, 1
    %s70 = scalar_select %p67, %s68, %s69
    %p73 = pneg %p67
    %p74 = scmp.eq.s32.totalorder %s11, 1
    %p75 = por %p73, %p74
    %p76 = scmp.ne.s32.totalorder %s68, %s71
    %p77 = scmp.eq.s32.totalorder %s11, 0
    %p78 = por %p76, %p77
    %p79 = scmp.ne.s32.totalorder %s68, %s71
    %p80 = scmp.eq.s32.totalorder %s16, 1
    %p81 = por %p79, %p80
    %p82 = scmp.ne.s32.totalorder %s71, %s72
    %p83 = scmp.eq.s32.totalorder %s16, 0
    %p84 = por %p82, %p83
    %p85 = scmp.ne.s32.totalorder %s71, %s72
    %p86 = scmp.eq.s32.totalorder %s17, 1
    %p87 = por %p85, %p86
    %p89 = scmp.ne.s32.totalorder %s72, %s88
    %p90 = scmp.eq.s32.totalorder %s17, 0
    %p91 = por %p89, %p90
    %s92 = ssub.s32 %s18, %s37
    %s93 = ssub.s32 %s20, %s29
    %s94 = sor.u32 %s92, %s93
    %s95 = ssub.s32 %s19, %s33
    %s96 = sor.u32 %s94, %s95
    %p97 = scmp.eq.s32.totalorder %s96, 0
    %s99 = sadd.s32 %s98, 1
    %s100 = scalar_select %p97, %s98, %s99
    %p103 = pneg %p97
    %p104 = scmp.eq.s32.totalorder %s11, 1
    %p105 = por %p103, %p104
    %p106 = scmp.ne.s32.totalorder %s98, %s101
    %p107 = scmp.eq.s32.totalorder %s11, 0
    %p108 = por %p106, %p107
    %p109 = scmp.ne.s32.totalorder %s98, %s101
    %p110 = scmp.eq.s32.totalorder %s16, 1
    %p111 = por %p109, %p110
    %p112 = scmp.ne.s32.totalorder %s101, %s102
    %p113 = scmp.eq.s32.totalorder %s16, 0
    %p114 = por %p112, %p113
    %p115 = scmp.ne.s32.totalorder %s101, %s102
    %p116 = scmp.eq.s32.totalorder %s17, 1
    %p117 = por %p115, %p116
    %p119 = scmp.ne.s32.totalorder %s102, %s118
    %p120 = scmp.eq.s32.totalorder %s17, 0
    %p121 = por %p119, %p120
    %s122 = ssub.s32 %s18, %s37
    %s123 = ssub.s32 %s19, %s33
    %s124 = sor.u32 %s122, %s123
    %p125 = scmp.eq.s32.totalorder %s124, 0
    %s127 = sadd.s32 %s126, 1
    %s128 = scalar_select %p125, %s126, %s127
    %p131 = pneg %p125
    %p132 = scmp.eq.s32.totalorder %s11, 1
    %p133 = por %p131, %p132
    %p134 = scmp.ne.s32.totalorder %s126, %s129
    %p135 = scmp.eq.s32.totalorder %s11, 0
    %p136 = por %p134, %p135
    %p137 = scmp.ne.s32.totalorder %s126, %s129
    %p138 = scmp.eq.s32.totalorder %s16, 1
    %p139 = por %p137, %p138
    %p140 = scmp.ne.s32.totalorder %s129, %s130
    %p141 = scmp.eq.s32.totalorder %s16, 0
    %p142 = por %p140, %p141
    %p143 = scmp.ne.s32.totalorder %s129, %s130
    %p144 = scmp.eq.s32.totalorder %s17, 1
    %p145 = por %p143, %p144
    %p147 = scmp.ne.s32.totalorder %s130, %s146
    %p148 = scmp.eq.s32.totalorder %s17, 0
    %p149 = por %p147, %p148
    %s150 = ssub.s32 %s18, %s37
    %s151 = ssub.s32 %s19, %s33
    %s152 = sor.u32 %s150, %s151
    %p153 = scmp.eq.s32.totalorder %s152, 0
    %s155 = sadd.s32 %s154, 1
    %s156 = scalar_select %p153, %s154, %s155
    %p159 = pneg %p153
    %p160 = scmp.eq.s32.totalorder %s11, 1
    %p161 = por %p159, %p160
    %p162 = scmp.ne.s32.totalorder %s154, %s157
    %p163 = scmp.eq.s32.totalorder %s11, 0
    %p164 = por %p162, %p163
    %p165 = scmp.ne.s32.totalorder %s154, %s157
    %p166 = scmp.eq.s32.totalorder %s16, 1
    %p167 = por %p165, %p166
    %p168 = scmp.ne.s32.totalorder %s157, %s158
    %p169 = scmp.eq.s32.totalorder %s16, 0
    %p170 = por %p168, %p169
    %p171 = scmp.ne.s32.totalorder %s157, %s158
    %p172 = scmp.eq.s32.totalorder %s17, 1
    %p173 = por %p171, %p172
    %p175 = scmp.ne.s32.totalorder %s158, %s174
    %p176 = scmp.eq.s32.totalorder %s17, 0
    %p177 = por %p175, %p176
    %p178 = scmp.le.s32.totalorder 1, %s11
    %p179 = scmp.lt.s32.totalorder %s11, 3
    %p180 = pnand %p178, %p179
    %p181 = pneg %p180
    // Predicated region
    $region9: #{vgg_layer_forward.2} parent=5 // pred_check
      _
    $region10: #{vgg_layer_forward.2} parent=5 // pred_check_branch
      %183 = sbr.rel (%p180) target = $region12
    $region11: #{vgg_layer_forward.2} parent=5 // pred_region
      %s184 = ssub.s32 %s11, 1
      // Predicated region
      $region13: #{vgg_layer_forward.2} parent=11 // pred_check
        %p185 = pneg %p84
      $region14: #{vgg_layer_forward.2} parent=11 // pred_check_branch
        %187 = sbr.rel (%p185) target = $region16
      $region15: #{vgg_layer_forward.2} parent=11 // pred_region
        %p188 = scmp.lt.s32.totalorder %s22, 0
        %s189 = scalar_select %p188, %s22, 0
        %s190 = smul.addr %s189, 4
        %s191 = scalar_lea.vmem %s1, %s190
      $region16: #{vgg_layer_forward.2} parent=11 // pred_fallthru
        _
    $region12: #{vgg_layer_forward.2} parent=5 // pred_fallthru
      _
    %p192 = scmp.lt.s32.totalorder %s11, 2
    // Predicated region
    $region17: #{vgg_layer_forward.2} parent=5 // pred_check
      %p193 = pneg %p192
    $region18: #{vgg_layer_forward.2} parent=5 // pred_check_branch
      %195 = sbr.rel (%p193) target = $region20
    $region19: #{vgg_layer_forward.2} parent=5 // pred_region
      // Predicated region
      $region21: #{vgg_layer_forward.2} parent=19 // pred_check
        %p196 = pneg %p52
      $region22: #{vgg_layer_forward.2} parent=19 // pred_check_branch
        %198 = sbr.rel (%p196) target = $region24
      $region23: #{vgg_layer_forward.2} parent=19 // pred_region
        %s199 = smul.u32 32, %s20
        %p200 = scmp.lt.s32.totalorder %s18, 1
        %s201 = scalar_select %p200, %s18, 1
        %p202 = scmp.lt.s32.totalorder %s199, 31
        %s203 = scalar_select %p202, %s199, 31
        %s204 = smul.addr %s201, 32
        %s205 = sadd.s32 %s203, %s204
        %s206 = smul.addr %s205, 4
        %s207 = scalar_lea.vmem %s0, %s206
        %s208 = smul.u32 32, %s20
      $region24: #{vgg_layer_forward.2} parent=19 // pred_fallthru
        _
    $region20: #{vgg_layer_forward.2} parent=5 // pred_fallthru
      _
    %p209 = scmp.le.s32.totalorder 1, %s11
    %p210 = scmp.lt.s32.totalorder %s11, 3
    %p211 = pnand %p209, %p210
    %p212 = pneg %p211
    // Predicated region
    $region25: #{vgg_layer_forward.2} parent=5 // pred_check
      _
    $region26: #{vgg_layer_forward.2} parent=5 // pred_check_branch
      %214 = sbr.rel (%p211) target = $region28
    $region27: #{vgg_layer_forward.2} parent=5 // pred_region
      %s215 = ssub.s32 %s11, 1
      %s216 = smul.u32 32, %s23
      %p217 = scmp.lt.s32.totalorder %s21, 1
      %s218 = scalar_select %p217, %s21, 1
      %p219 = scmp.lt.s32.totalorder %s216, 31
      %s220 = scalar_select %p219, %s216, 31
      %s221 = smul.addr %s218, 32
      %s222 = sadd.s32 %s220, %s221
      %s223 = smul.addr %s222, 4
      %s224 = scalar_lea.vmem %s0, %s223
      %p225 = pneg %p58
      %p226 = pneg %p55
      %p227 = scmp.lt.s32.totalorder %s22, 0
      %s228 = scalar_select %p227, %s22, 0
      %s229 = smul.addr %s228, 4
      %s230 = scalar_lea.vmem %s1, %s229
      %p231 = pneg %p84
      %p232 = pneg %p81
      %p233 = pneg %p114
      %p234 = pneg %p111
      %s235 = smul.u32 32, %s23
      %p236 = scmp.lt.s32.totalorder %s21, 1
      %s237 = scalar_select %p236, %s21, 1
      %p238 = scmp.lt.s32.totalorder %s235, 31
      %s239 = scalar_select %p238, %s235, 31
      %p240 = scmp.lt.s32.totalorder %s22, 0
      %s241 = scalar_select %p240, %s22, 0
      %s242 = sadd.s32 %s241, %s239
      %s243 = smul.addr %s237, 32
      %s244 = sadd.s32 %s242, %s243
      %s245 = smul.addr %s244, 8
      %s246 = scalar_lea.vmem %s2, %s245
      %p247 = pneg %p142
      %p248 = pneg %p139
      %p249 = scmp.lt.s32.totalorder %s21, 1
      %s250 = scalar_select %p249, %s21, 1
      %p251 = scmp.lt.s32.totalorder %s22, 0
      %s252 = scalar_select %p251, %s22, 0
      %s253 = sadd.s32 %s252, %s250
      %s254 = scalar_lea.vmem %s3, %s253
      %p255 = pneg %p170
      %p256 = pneg %p167
      %p257 = scmp.lt.s32.totalorder %s21, 1
      %s258 = scalar_select %p257, %s21, 1
      %p259 = scmp.lt.s32.totalorder %s22, 0
      %s260 = scalar_select %p259, %s22, 0
      %s261 = sadd.s32 %s260, %s258
      %s262 = scalar_lea.vmem %s4, %s261
      %s263 = smul.u32 32, %s23
      %p264 = scmp.lt.s32.totalorder %s21, 1
      %s265 = scalar_select %p264, %s21, 1
      %p266 = scmp.lt.s32.totalorder %s263, 31
      %s267 = scalar_select %p266, %s263, 31
      %s268 = smul.addr %s265, 32
      %s269 = sadd.s32 %s267, %s268
      %s270 = smul.addr %s269, 4
      %s271 = scalar_lea.vmem %s0, %s270
      %s272 = smul.u32 32, %s23
      %p273 = scmp.lt.s32.totalorder %s22, 0
      %s274 = scalar_select %p273, %s22, 0
      %s275 = smul.addr %s274, 4
      %s276 = scalar_lea.vmem %s1, %s275
      %s277 = smul.u32 32, %s23
      %p278 = scmp.lt.s32.totalorder %s21, 1
      %s279 = scalar_select %p278, %s21, 1
      %p280 = scmp.lt.s32.totalorder %s277, 31
      %s281 = scalar_select %p280, %s277, 31
      %p282 = scmp.lt.s32.totalorder %s22, 0
      %s283 = scalar_select %p282, %s22, 0
      %s284 = sadd.s32 %s283, %s281
      %s285 = smul.addr %s279, 32
      %s286 = sadd.s32 %s284, %s285
      %s287 = smul.addr %s286, 8
      %s288 = scalar_lea.vmem %s2, %s287
      %s289 = smul.u32 32, %s23
      %p290 = scmp.lt.s32.totalorder %s21, 1
      %s291 = scalar_select %p290, %s21, 1
      %p292 = scmp.lt.s32.totalorder %s22, 0
      %s293 = scalar_select %p292, %s22, 0
      %s294 = sadd.s32 %s293, %s291
      %s295 = scalar_lea.vmem %s3, %s294
      %p296 = scmp.lt.s32.totalorder %s21, 1
      %s297 = scalar_select %p296, %s21, 1
      %p298 = scmp.lt.s32.totalorder %s22, 0
      %s299 = scalar_select %p298, %s22, 0
      %s300 = sadd.s32 %s299, %s297
      %s301 = scalar_lea.vmem %s4, %s300
      %p303 = scmp.eq.s32.totalorder %s23, 0
      // Predicated region
      $region29: #{vgg_layer_forward.2} parent=27 // pred_check
        %p304 = pneg %p303
      $region30: #{vgg_layer_forward.2} parent=27 // pred_check_branch
        %306 = sbr.rel (%p304) target = $region32
      $region31: #{vgg_layer_forward.2} parent=27 // pred_region
        %307 = vst [vmem:[%s295] sm:$0x1] 0.0
        %308 = vst [vmem:[%s301] sm:$0x1] 0.0
      $region32: #{vgg_layer_forward.2} parent=27 // pred_fallthru
        _
      %v309 = vld [vmem:[%s271] sm:$0xf]
      %v310 = vld [vmem:[%s271 + $0x4] sm:$0xf]
      %v311 = vld [vmem:[%s271 + $0x8] sm:$0xf]
      %v312 = vld [vmem:[%s271 + $0xc] sm:$0xf]
      %v313 = vld [vmem:[%s271 + $0x10] sm:$0xf]
      %v314 = vld [vmem:[%s271 + $0x14] sm:$0xf]
      %v315 = vld [vmem:[%s271 + $0x18] sm:$0xf]
      %v316 = vld [vmem:[%s271 + $0x1c] sm:$0xf]
      %v317 = vld [vmem:[%s271 + $0x20] sm:$0xf]
      %v318 = vld [vmem:[%s271 + $0x24] sm:$0xf]
      %v319 = vld [vmem:[%s271 + $0x28] sm:$0xf]
      %v320 = vld [vmem:[%s271 + $0x2c] sm:$0xf]
      %v321 = vld [vmem:[%s271 + $0x30] sm:$0xf]
      %v322 = vld [vmem:[%s271 + $0x34] sm:$0xf]
      %v323 = vld [vmem:[%s271 + $0x38] sm:$0xf]
      %v324 = vld [vmem:[%s271 + $0x3c] sm:$0xf]
      %v325 = vld [vmem:[%s271 + $0x40] sm:$0xf]
      %v326 = vld [vmem:[%s271 + $0x44] sm:$0xf]
      %v327 = vld [vmem:[%s271 + $0x48] sm:$0xf]
      %v328 = vld [vmem:[%s271 + $0x4c] sm:$0xf]
      %v329 = vld [vmem:[%s271 + $0x50] sm:$0xf]
      %v330 = vld [vmem:[%s271 + $0x54] sm:$0xf]
      %v331 = vld [vmem:[%s271 + $0x58] sm:$0xf]
      %v332 = vld [vmem:[%s271 + $0x5c] sm:$0xf]
      %v333 = vld [vmem:[%s271 + $0x60] sm:$0xf]
      %v334 = vld [vmem:[%s271 + $0x64] sm:$0xf]
      %v335 = vld [vmem:[%s271 + $0x68] sm:$0xf]
      %v336 = vld [vmem:[%s271 + $0x6c] sm:$0xf]
      %v337 = vld [vmem:[%s271 + $0x70] sm:$0xf]
      %v338 = vld [vmem:[%s271 + $0x74] sm:$0xf]
      %v339 = vld [vmem:[%s271 + $0x78] sm:$0xf]
      %v340 = vld [vmem:[%s271 + $0x7c] sm:$0xf]
      %v341 = vld [vmem:[%s276] sm:$0xf]
      %v342 = vld [vmem:[%s276 + $0x4] sm:$0xf]
      %v343 = vld [vmem:[%s276 + $0x8] sm:$0xf]
      %v344 = vld [vmem:[%s276 + $0xc] sm:$0xf]
      %v345 = vld [vmem:[%s276 + $0x10] sm:$0x3]
      %v378 = vunpack.c.l.b16 %v309
      %v379 = vunpack.c.l.b16 %v310
      %v380 = vunpack.c.l.b16 %v311
      %v381 = vunpack.c.l.b16 %v312
      %v382 = vunpack.c.l.b16 %v313
      %v383 = vunpack.c.l.b16 %v314
      %v384 = vunpack.c.l.b16 %v315
      %v385 = vunpack.c.l.b16 %v316
      %v386 = vunpack.c.l.b16 %v317
      %v387 = vunpack.c.l.b16 %v318
      %v388 = vunpack.c.l.b16 %v319
      %v389 = vunpack.c.l.b16 %v320
      %v390 = vunpack.c.l.b16 %v321
      %v391 = vunpack.c.l.b16 %v322
      %v392 = vunpack.c.l.b16 %v323
      %v393 = vunpack.c.l.b16 %v324
      %v394 = vunpack.c.l.b16 %v325
      %v395 = vunpack.c.l.b16 %v326
      %v396 = vunpack.c.l.b16 %v327
      %v397 = vunpack.c.l.b16 %v328
      %v398 = vunpack.c.l.b16 %v329
      %v399 = vunpack.c.l.b16 %v330
      %v400 = vunpack.c.l.b16 %v331
      %v401 = vunpack.c.l.b16 %v332
      %v402 = vunpack.c.l.b16 %v333
      %v403 = vunpack.c.l.b16 %v334
      %v404 = vunpack.c.l.b16 %v335
      %v405 = vunpack.c.l.b16 %v336
      %v406 = vunpack.c.l.b16 %v337
      %v407 = vunpack.c.l.b16 %v338
      %v408 = vunpack.c.l.b16 %v339
      %v409 = vunpack.c.l.b16 %v340
      %v410 = vpack.c.b16 %v379, %v378
      %v411 = vpack.c.b16 %v381, %v380
      %v412 = vpack.c.b16 %v383, %v382
      %v413 = vpack.c.b16 %v385, %v384
      %v414 = vpack.c.b16 %v387, %v386
      %v415 = vpack.c.b16 %v389, %v388
      %v416 = vpack.c.b16 %v391, %v390
      %v417 = vpack.c.b16 %v393, %v392
      %v418 = vpack.c.b16 %v395, %v394
      %v419 = vpack.c.b16 %v397, %v396
      %v420 = vpack.c.b16 %v399, %v398
      %v421 = vpack.c.b16 %v401, %v400
      %v422 = vpack.c.b16 %v403, %v402
      %v423 = vpack.c.b16 %v405, %v404
      %v424 = vpack.c.b16 %v407, %v406
      %v425 = vpack.c.b16 %v409, %v408
      %v431 = vunpack.c.l.b16 %v341
      %v432 = vunpack.c.l.b16 %v342
      %v433 = vunpack.c.l.b16 %v343
      %v434 = vunpack.c.l.b16 %v344
      %v435 = vunpack.c.l.b16 %v345
      %v436 = vpack.c.b16 %v432, %v431
      %v437 = vpack.c.b16 %v434, %v433
      %v438 = vpack.c.b16 %v435, %v435
      %vm441 = vcmask 293888
      %v443 = vsel %vm441, %v410, 0
      %v446 = vsel %vm441, %v411, 0
      %v449 = vsel %vm441, %v412, 0
      %v452 = vsel %vm441, %v413, 0
      %v455 = vsel %vm441, %v414, 0
      %v458 = vsel %vm441, %v415, 0
      %v461 = vsel %vm441, %v416, 0
      %v464 = vsel %vm441, %v417, 0
      %v467 = vsel %vm441, %v418, 0
      %v470 = vsel %vm441, %v419, 0
      %v473 = vsel %vm441, %v420, 0
      %v476 = vsel %vm441, %v421, 0
      %v479 = vsel %vm441, %v422, 0
      %v482 = vsel %vm441, %v423, 0
      %v485 = vsel %vm441, %v424, 0
      %v488 = vsel %vm441, %v425, 0
      %vm490 = vcmask 1041408
      %v492 = vsel %vm490, %v438, 0
      %494 = vmatprep.subr.bf16.mxu0 0
      %495 = vmatpush1.bf16.msra.mxu0 0
      %496 = vmatprep.subr.bf16.mxu0 0
      %497 = vmatpush1.bf16.msra.mxu0 0
      %498 = vmatprep.subr.bf16.mxu0 0
      %499 = vmatpush1.bf16.msra.mxu0 0
      %500 = vmatprep.subr.bf16.mxu0 0
      %501 = vmatpush1.bf16.msra.mxu0 0
      %502 = vmatprep.subr.bf16.mxu0 0
      %503 = vmatpush1.bf16.msra.mxu0 0
      %504 = vmatprep.subr.bf16.mxu0 0
      %505 = vmatpush1.bf16.msra.mxu0 %v492
      %506 = vmatprep.subr.bf16.mxu0 0
      %507 = vmatpush1.bf16.msra.mxu0 %v437
      %508 = vmatprep.subr.bf16.mxu0 0
      %509 = vmatpush1.bf16.msra.mxu0 %v436
      %510 = vmatprep.subr.bf16.mxu0 0
      %511 = vmatpush2.bf16.msra.mxu0 0
      %512 = vmatprep.subr.bf16.mxu0 0
      %513 = vmatpush2.bf16.msra.mxu0 0
      %514 = vmatprep.subr.bf16.mxu0 0
      %515 = vmatpush2.bf16.msra.mxu0 0
      %516 = vmatprep.subr.bf16.mxu0 0
      %517 = vmatpush2.bf16.msra.mxu0 0
      %518 = vmatprep.subr.bf16.mxu0 0
      %519 = vmatpush2.bf16.msra.mxu0 0
      %520 = vmatprep.subr.bf16.mxu0 0
      %521 = vmatpush2.bf16.msra.mxu0 0
      %522 = vmatprep.subr.bf16.mxu0 0
      %523 = vmatpush2.bf16.msra.mxu0 0
      %524 = vmatprep.subr.bf16.mxu0 0
      %525 = vmatpush2.bf16.msra.mxu0 0
      %526 = vmatprep.mubr.bf16.mxu0 0
      %527 = vmatmul.mubr.bf16.gmra.mxu0 %v443
      %v528 = vpop.f32.mrf.mxu0
      %v529 = vadd.f32 0.0, %v528
      %v530 = vpop.f32.mrf.mxu0
      %v531 = vpop.f32.mrf.mxu0
      %v532 = vadd.f32 0.0, %v531
      %v533 = vpop.f32.mrf.mxu0
      %534 = vmatprep.mubr.bf16.mxu0 0
      %535 = vmatmul.mubr.bf16.gmra.mxu0 %v446
      %v536 = vpop.f32.mrf.mxu0
      %v537 = vadd.f32 0.0, %v536
      %v538 = vpop.f32.mrf.mxu0
      %v539 = vpop.f32.mrf.mxu0
      %v540 = vadd.f32 0.0, %v539
      %v541 = vpop.f32.mrf.mxu0
      %542 = vmatprep.mubr.bf16.mxu0 0
      %543 = vmatmul.mubr.bf16.gmra.mxu0 %v449
      %v544 = vpop.f32.mrf.mxu0
      %v545 = vadd.f32 0.0, %v544
      %v546 = vpop.f32.mrf.mxu0
      %v547 = vpop.f32.mrf.mxu0
      %v548 = vadd.f32 0.0, %v547
      %v549 = vpop.f32.mrf.mxu0
      %550 = vmatprep.mubr.bf16.mxu0 0
      %551 = vmatmul.mubr.bf16.gmra.mxu0 %v452
      %v552 = vpop.f32.mrf.mxu0
      %v553 = vadd.f32 0.0, %v552
      %v554 = vpop.f32.mrf.mxu0
      %v555 = vpop.f32.mrf.mxu0
      %v556 = vadd.f32 0.0, %v555
      %v557 = vpop.f32.mrf.mxu0
      %558 = vmatprep.mubr.bf16.mxu0 0
      %559 = vmatmul.mubr.bf16.gmra.mxu0 %v455
      %v560 = vpop.f32.mrf.mxu0
      %v561 = vadd.f32 0.0, %v560
      %v562 = vpop.f32.mrf.mxu0
      %v563 = vpop.f32.mrf.mxu0
      %v564 = vadd.f32 0.0, %v563
      %v565 = vpop.f32.mrf.mxu0
      %566 = vmatprep.mubr.bf16.mxu0 0
      %567 = vmatmul.mubr.bf16.gmra.mxu0 %v458
      %v568 = vpop.f32.mrf.mxu0
      %v569 = vadd.f32 0.0, %v568
      %v570 = vpop.f32.mrf.mxu0
      %v571 = vpop.f32.mrf.mxu0
      %v572 = vadd.f32 0.0, %v571
      %v573 = vpop.f32.mrf.mxu0
      %574 = vmatprep.mubr.bf16.mxu0 0
      %575 = vmatmul.mubr.bf16.gmra.mxu0 %v461
      %v576 = vpop.f32.mrf.mxu0
      %v577 = vadd.f32 0.0, %v576
      %v578 = vpop.f32.mrf.mxu0
      %v579 = vpop.f32.mrf.mxu0
      %v580 = vadd.f32 0.0, %v579
      %v581 = vpop.f32.mrf.mxu0
      %582 = vmatprep.mubr.bf16.mxu0 0
      %583 = vmatmul.mubr.bf16.gmra.mxu0 %v464
      %v584 = vpop.f32.mrf.mxu0
      %v585 = vadd.f32 0.0, %v584
      %v586 = vpop.f32.mrf.mxu0
      %v587 = vpop.f32.mrf.mxu0
      %v588 = vadd.f32 0.0, %v587
      %v589 = vpop.f32.mrf.mxu0
      %590 = vmatprep.mubr.bf16.mxu0 0
      %591 = vmatmul.mubr.bf16.gmra.mxu0 %v467
      %v592 = vpop.f32.mrf.mxu0
      %v593 = vadd.f32 0.0, %v592
      %v594 = vpop.f32.mrf.mxu0
      %v595 = vpop.f32.mrf.mxu0
      %v596 = vadd.f32 0.0, %v595
      %v597 = vpop.f32.mrf.mxu0
      %598 = vmatprep.mubr.bf16.mxu0 0
      %599 = vmatmul.mubr.bf16.gmra.mxu0 %v470
      %v600 = vpop.f32.mrf.mxu0
      %v601 = vadd.f32 0.0, %v600
      %v602 = vpop.f32.mrf.mxu0
      %v603 = vpop.f32.mrf.mxu0
      %v604 = vadd.f32 0.0, %v603
      %v605 = vpop.f32.mrf.mxu0
      %606 = vmatprep.mubr.bf16.mxu0 0
      %607 = vmatmul.mubr.bf16.gmra.mxu0 %v473
      %v608 = vpop.f32.mrf.mxu0
      %v609 = vadd.f32 0.0, %v608
      %v610 = vpop.f32.mrf.mxu0
      %v611 = vpop.f32.mrf.mxu0
      %v612 = vadd.f32 0.0, %v611
      %v613 = vpop.f32.mrf.mxu0
      %614 = vmatprep.mubr.bf16.mxu0 0
      %615 = vmatmul.mubr.bf16.gmra.mxu0 %v476
      %v616 = vpop.f32.mrf.mxu0
      %v617 = vadd.f32 0.0, %v616
      %v618 = vpop.f32.mrf.mxu0
      %v619 = vpop.f32.mrf.mxu0
      %v620 = vadd.f32 0.0, %v619
      %v621 = vpop.f32.mrf.mxu0
      %622 = vmatprep.mubr.bf16.mxu0 0
      %623 = vmatmul.mubr.bf16.gmra.mxu0 %v479
      %v624 = vpop.f32.mrf.mxu0
      %v625 = vadd.f32 0.0, %v624
      %v626 = vpop.f32.mrf.mxu0
      %v627 = vpop.f32.mrf.mxu0
      %v628 = vadd.f32 0.0, %v627
      %v629 = vpop.f32.mrf.mxu0
      %630 = vmatprep.mubr.bf16.mxu0 0
      %631 = vmatmul.mubr.bf16.gmra.mxu0 %v482
      %v632 = vpop.f32.mrf.mxu0
      %v633 = vadd.f32 0.0, %v632
      %v634 = vpop.f32.mrf.mxu0
      %v635 = vpop.f32.mrf.mxu0
      %v636 = vadd.f32 0.0, %v635
      %v637 = vpop.f32.mrf.mxu0
      %638 = vmatprep.mubr.bf16.mxu0 0
      %639 = vmatmul.mubr.bf16.gmra.mxu0 %v485
      %v640 = vpop.f32.mrf.mxu0
      %v641 = vadd.f32 0.0, %v640
      %v642 = vpop.f32.mrf.mxu0
      %v643 = vpop.f32.mrf.mxu0
      %v644 = vadd.f32 0.0, %v643
      %v645 = vpop.f32.mrf.mxu0
      %646 = vmatprep.mubr.bf16.mxu0 0
      %647 = vmatmul.mubr.bf16.gmra.mxu0 %v488
      %v648 = vpop.f32.mrf.mxu0
      %v649 = vadd.f32 0.0, %v648
      %v650 = vpop.f32.mrf.mxu0
      %v651 = vpop.f32.mrf.mxu0
      %v652 = vadd.f32 0.0, %v651
      %v653 = vpop.f32.mrf.mxu0
      %654 = vdwg.mxu0
      %655 = vst [vmem:[%s288] sm:$0xff] %v529
      %656 = vst [vmem:[%s288 + $0x8] sm:$0xff] %v532
      %657 = vst [vmem:[%s288 + $0x10] sm:$0xff] %v537
      %658 = vst [vmem:[%s288 + $0x18] sm:$0xff] %v540
      %659 = vst [vmem:[%s288 + $0x20] sm:$0xff] %v545
      %660 = vst [vmem:[%s288 + $0x28] sm:$0xff] %v548
      %661 = vst [vmem:[%s288 + $0x30] sm:$0xff] %v553
      %662 = vst [vmem:[%s288 + $0x38] sm:$0xff] %v556
      %663 = vst [vmem:[%s288 + $0x40] sm:$0xff] %v561
      %664 = vst [vmem:[%s288 + $0x48] sm:$0xff] %v564
      %665 = vst [vmem:[%s288 + $0x50] sm:$0xff] %v569
      %666 = vst [vmem:[%s288 + $0x58] sm:$0xff] %v572
      %667 = vst [vmem:[%s288 + $0x60] sm:$0xff] %v577
      %668 = vst [vmem:[%s288 + $0x68] sm:$0xff] %v580
      %669 = vst [vmem:[%s288 + $0x70] sm:$0xff] %v585
      %670 = vst [vmem:[%s288 + $0x78] sm:$0xff] %v588
      %671 = vst [vmem:[%s288 + $0x80] sm:$0xff] %v593
      %672 = vst [vmem:[%s288 + $0x88] sm:$0xff] %v596
      %673 = vst [vmem:[%s288 + $0x90] sm:$0xff] %v601
      %674 = vst [vmem:[%s288 + $0x98] sm:$0xff] %v604
      %675 = vst [vmem:[%s288 + $0xa0] sm:$0xff] %v609
      %676 = vst [vmem:[%s288 + $0xa8] sm:$0xff] %v612
      %677 = vst [vmem:[%s288 + $0xb0] sm:$0xff] %v617
      %678 = vst [vmem:[%s288 + $0xb8] sm:$0xff] %v620
      %679 = vst [vmem:[%s288 + $0xc0] sm:$0xff] %v625
      %680 = vst [vmem:[%s288 + $0xc8] sm:$0xff] %v628
      %681 = vst [vmem:[%s288 + $0xd0] sm:$0xff] %v633
      %682 = vst [vmem:[%s288 + $0xd8] sm:$0xff] %v636
      %683 = vst [vmem:[%s288 + $0xe0] sm:$0xff] %v641
      %684 = vst [vmem:[%s288 + $0xe8] sm:$0xff] %v644
      %685 = vst [vmem:[%s288 + $0xf0] sm:$0xff] %v649
      %686 = vst [vmem:[%s288 + $0xf8] sm:$0xff] %v652
      %v687 = vld [vmem:[%s295] sm:$0x1]
      %v688 = vadd.f32 %v529, %v532
      %v689 = vadd.f32 %v688, %v537
      %v690 = vadd.f32 %v689, %v540
      %v691 = vadd.f32 %v690, %v545
      %v692 = vadd.f32 %v691, %v548
      %v693 = vadd.f32 %v692, %v553
      %v694 = vadd.f32 %v693, %v556
      %v695 = vadd.f32 %v694, %v561
      %v696 = vadd.f32 %v695, %v564
      %v697 = vadd.f32 %v696, %v569
      %v698 = vadd.f32 %v697, %v572
      %v699 = vadd.f32 %v698, %v577
      %v700 = vadd.f32 %v699, %v580
      %v701 = vadd.f32 %v700, %v585
      %v702 = vadd.f32 %v701, %v588
      %v703 = vadd.f32 %v702, %v593
      %v704 = vadd.f32 %v703, %v596
      %v705 = vadd.f32 %v704, %v601
      %v706 = vadd.f32 %v705, %v604
      %v707 = vadd.f32 %v706, %v609
      %v708 = vadd.f32 %v707, %v612
      %v709 = vadd.f32 %v708, %v617
      %v710 = vadd.f32 %v709, %v620
      %v711 = vadd.f32 %v710, %v625
      %v712 = vadd.f32 %v711, %v628
      %v713 = vadd.f32 %v712, %v633
      %v714 = vadd.f32 %v713, %v636
      %v715 = vadd.f32 %v714, %v641
      %v716 = vadd.f32 %v715, %v644
      %v717 = vadd.f32 %v716, %v649
      %v718 = vadd.f32 %v717, %v652
      %v719 = vrot.slane %v718, 4
      %v720 = vadd.f32 %v718, %v719
      %v721 = vrot.slane %v720, 2
      %v722 = vadd.f32 %v720, %v721
      %v723 = vrot.slane %v722, 1
      %v724 = vadd.f32 %v722, %v723
      %v725 = vadd.f32 %v687, %v724
      %726 = vst [vmem:[%s295] sm:$0x1] %v725
      %v727 = vld [vmem:[%s301] sm:$0x1]
      %v728 = vmul.f32 %v529, %v529
      %v729 = vmul.f32 %v532, %v532
      %v730 = vmul.f32 %v537, %v537
      %v731 = vmul.f32 %v540, %v540
      %v732 = vmul.f32 %v545, %v545
      %v733 = vmul.f32 %v548, %v548
      %v734 = vmul.f32 %v553, %v553
      %v735 = vmul.f32 %v556, %v556
      %v736 = vmul.f32 %v561, %v561
      %v737 = vmul.f32 %v564, %v564
      %v738 = vmul.f32 %v569, %v569
      %v739 = vmul.f32 %v572, %v572
      %v740 = vmul.f32 %v577, %v577
      %v741 = vmul.f32 %v580, %v580
      %v742 = vmul.f32 %v585, %v585
      %v743 = vmul.f32 %v588, %v588
      %v744 = vmul.f32 %v593, %v593
      %v745 = vmul.f32 %v596, %v596
      %v746 = vmul.f32 %v601, %v601
      %v747 = vmul.f32 %v604, %v604
      %v748 = vmul.f32 %v609, %v609
      %v749 = vmul.f32 %v612, %v612
      %v750 = vmul.f32 %v617, %v617
      %v751 = vmul.f32 %v620, %v620
      %v752 = vmul.f32 %v625, %v625
      %v753 = vmul.f32 %v628, %v628
      %v754 = vmul.f32 %v633, %v633
      %v755 = vmul.f32 %v636, %v636
      %v756 = vmul.f32 %v641, %v641
      %v757 = vmul.f32 %v644, %v644
      %v758 = vmul.f32 %v649, %v649
      %v759 = vmul.f32 %v652, %v652
      %v760 = vadd.f32 %v728, %v729
      %v761 = vadd.f32 %v760, %v730
      %v762 = vadd.f32 %v761, %v731
      %v763 = vadd.f32 %v762, %v732
      %v764 = vadd.f32 %v763, %v733
      %v765 = vadd.f32 %v764, %v734
      %v766 = vadd.f32 %v765, %v735
      %v767 = vadd.f32 %v766, %v736
      %v768 = vadd.f32 %v767, %v737
      %v769 = vadd.f32 %v768, %v738
      %v770 = vadd.f32 %v769, %v739
      %v771 = vadd.f32 %v770, %v740
      %v772 = vadd.f32 %v771, %v741
      %v773 = vadd.f32 %v772, %v742
      %v774 = vadd.f32 %v773, %v743
      %v775 = vadd.f32 %v774, %v744
      %v776 = vadd.f32 %v775, %v745
      %v777 = vadd.f32 %v776, %v746
      %v778 = vadd.f32 %v777, %v747
      %v779 = vadd.f32 %v778, %v748
      %v780 = vadd.f32 %v779, %v749
      %v781 = vadd.f32 %v780, %v750
      %v782 = vadd.f32 %v781, %v751
      %v783 = vadd.f32 %v782, %v752
      %v784 = vadd.f32 %v783, %v753
      %v785 = vadd.f32 %v784, %v754
      %v786 = vadd.f32 %v785, %v755
      %v787 = vadd.f32 %v786, %v756
      %v788 = vadd.f32 %v787, %v757
      %v789 = vadd.f32 %v788, %v758
      %v790 = vadd.f32 %v789, %v759
      %v791 = vrot.slane %v790, 4
      %v792 = vadd.f32 %v790, %v791
      %v793 = vrot.slane %v792, 2
      %v794 = vadd.f32 %v792, %v793
      %v795 = vrot.slane %v794, 1
      %v796 = vadd.f32 %v794, %v795
      %v797 = vadd.f32 %v727, %v796
      %798 = vst [vmem:[%s301] sm:$0x1] %v797
      %s799 = smul.u32 32, %s23
      %p800 = scmp.lt.s32.totalorder %s21, 1
      %s801 = scalar_select %p800, %s21, 1
      %p802 = scmp.lt.s32.totalorder %s799, 31
      %s803 = scalar_select %p802, %s799, 31
      %p804 = scmp.lt.s32.totalorder %s22, 0
      %s805 = scalar_select %p804, %s22, 0
      %s806 = sadd.s32 %s805, %s803
      %s807 = smul.addr %s801, 32
      %s808 = sadd.s32 %s806, %s807
      %s809 = smul.addr %s808, 8
      %s810 = scalar_lea.vmem %s2, %s809
      %p811 = scmp.lt.s32.totalorder %s21, 1
      %s812 = scalar_select %p811, %s21, 1
      %p813 = scmp.lt.s32.totalorder %s22, 0
      %s814 = scalar_select %p813, %s22, 0
      %s815 = sadd.s32 %s814, %s812
      %s816 = scalar_lea.vmem %s3, %s815
      %p817 = scmp.lt.s32.totalorder %s21, 1
      %s818 = scalar_select %p817, %s21, 1
      %p819 = scmp.lt.s32.totalorder %s22, 0
      %s820 = scalar_select %p819, %s22, 0
      %s821 = sadd.s32 %s820, %s818
      %s822 = scalar_lea.vmem %s4, %s821
      // Predicated region
      $region33: #{vgg_layer_forward.2} parent=27 // pred_check
        %p823 = pneg %p111
      $region34: #{vgg_layer_forward.2} parent=27 // pred_check_branch
        %825 = sbr.rel (%p823) target = $region36
      $region35: #{vgg_layer_forward.2} parent=27 // pred_region
        %s826 = smul.u32 32, %s23
      $region36: #{vgg_layer_forward.2} parent=27 // pred_fallthru
        _
      // Predicated region
      $region37: #{vgg_layer_forward.2} parent=27 // pred_check
        %p827 = pneg %p139
      $region38: #{vgg_layer_forward.2} parent=27 // pred_check_branch
        %829 = sbr.rel (%p827) target = $region40
      $region39: #{vgg_layer_forward.2} parent=27 // pred_region
        _
      $region40: #{vgg_layer_forward.2} parent=27 // pred_fallthru
        _
      // Predicated region
      $region41: #{vgg_layer_forward.2} parent=27 // pred_check
        %p830 = pneg %p167
      $region42: #{vgg_layer_forward.2} parent=27 // pred_check_branch
        %832 = sbr.rel (%p830) target = $region44
      $region43: #{vgg_layer_forward.2} parent=27 // pred_region
        _
      $region44: #{vgg_layer_forward.2} parent=27 // pred_fallthru
        _
    $region28: #{vgg_layer_forward.2} parent=5 // pred_fallthru
      _
    %p833 = scmp.le.s32.totalorder 2, %s11
    // Predicated region
    $region45: #{vgg_layer_forward.2} parent=5 // pred_check
      %p834 = pneg %p833
    $region46: #{vgg_layer_forward.2} parent=5 // pred_check_branch
      %836 = sbr.rel (%p834) target = $region48
    $region47: #{vgg_layer_forward.2} parent=5 // pred_region
      %s837 = ssub.s32 %s11, 2
      // Predicated region
      $region49: #{vgg_layer_forward.2} parent=47 // pred_check
        %p838 = pneg %p117
      $region50: #{vgg_layer_forward.2} parent=47 // pred_check_branch
        %840 = sbr.rel (%p838) target = $region52
      $region51: #{vgg_layer_forward.2} parent=47 // pred_region
        %s841 = smul.u32 32, %s26
        %p842 = scmp.lt.s32.totalorder %s24, 1
        %s843 = scalar_select %p842, %s24, 1
        %p844 = scmp.lt.s32.totalorder %s841, 31
        %s845 = scalar_select %p844, %s841, 31
        %p846 = scmp.lt.s32.totalorder %s25, 0
        %s847 = scalar_select %p846, %s25, 0
        %s848 = sadd.s32 %s847, %s845
        %s849 = smul.addr %s843, 32
        %s850 = sadd.s32 %s848, %s849
        %s851 = smul.addr %s850, 8
        %s852 = scalar_lea.vmem %s2, %s851
      $region52: #{vgg_layer_forward.2} parent=47 // pred_fallthru
        _
      // Predicated region
      $region53: #{vgg_layer_forward.2} parent=47 // pred_check
        %p853 = pneg %p145
      $region54: #{vgg_layer_forward.2} parent=47 // pred_check_branch
        %855 = sbr.rel (%p853) target = $region56
      $region55: #{vgg_layer_forward.2} parent=47 // pred_region
        %p856 = scmp.lt.s32.totalorder %s24, 1
        %s857 = scalar_select %p856, %s24, 1
        %p858 = scmp.lt.s32.totalorder %s25, 0
        %s859 = scalar_select %p858, %s25, 0
        %s860 = sadd.s32 %s859, %s857
        %s861 = scalar_lea.vmem %s3, %s860
      $region56: #{vgg_layer_forward.2} parent=47 // pred_fallthru
        _
      // Predicated region
      $region57: #{vgg_layer_forward.2} parent=47 // pred_check
        %p862 = pneg %p173
      $region58: #{vgg_layer_forward.2} parent=47 // pred_check_branch
        %864 = sbr.rel (%p862) target = $region60
      $region59: #{vgg_layer_forward.2} parent=47 // pred_region
        %p865 = scmp.lt.s32.totalorder %s24, 1
        %s866 = scalar_select %p865, %s24, 1
        %p867 = scmp.lt.s32.totalorder %s25, 0
        %s868 = scalar_select %p867, %s25, 0
        %s869 = sadd.s32 %s868, %s866
        %s870 = scalar_lea.vmem %s4, %s869
      $region60: #{vgg_layer_forward.2} parent=47 // pred_fallthru
        _
    $region48: #{vgg_layer_forward.2} parent=5 // pred_fallthru
      _
  $region6: #{vgg_layer_forward.2} parent=0 // loop_footer
    %s15 = sadd.s32 1, %s11
  $region7: #{vgg_layer_forward.2} parent=0 // loop_footer_branch
    %10 = sbr.rel target = $region3
  $region8: #{vgg_layer_forward.2} parent=0 // loop_exit
    _

</llo_original>
